<compile_context>
chip_gen: v5e
topology: v5e:2x2
jax: 0.10.0
libtpu: 0.0.40
codegen_flags: <defaults>
</compile_context>

<pallas_src>
import jax
import jax.numpy as jnp
from jax import lax
from jax.experimental import pallas as pl
from jax.experimental.pallas import tpu as pltpu


# ------------------------------ Pallas kernel --------------------------------

def _siamese_backbone_kernel(x_ref, band_ref, cbias_ref, w2_ref, fcb_ref,
                             o_ref, relu_ref):
    """Fused conv3x3 + bias + ReLU + flatten + Linear for BOTH branches.

    x_ref    : (2B, H+2, (W+2)*C)    zero-padded inputs, branches stacked on batch
    band_ref : (KH, (W+2)*C, W*Cout) banded conv weights (one band per kh)
    cbias_ref: (1, W*Cout)           conv bias tiled over w
    w2_ref   : (H*W*Cout, hidden)    fc weights permuted to (h, w, co) row order
    fcb_ref  : (1, hidden)           fc bias
    o_ref    : (B, 2*hidden)         concatenated output  [feat(x1) | feat(x2)]
    relu_ref : (2B, H*W*Cout)        VMEM scratch: flattened ReLU activations
    """
    B2, Hp2, KC = x_ref.shape
    KH = band_ref.shape[0]
    H = Hp2 - (KH - 1)
    WCout = band_ref.shape[2]
    hidden = w2_ref.shape[1]
    B = B2 // 2

    # --- Conv3x3 (SAME) as KH banded matmuls -> one (2B*H, W*Cout) tile,
    #     never written to HBM.
    acc = jnp.zeros((B2 * H, WCout), jnp.float32)
    for kh in range(KH):
        lhs = x_ref[:, pl.ds(kh, H), :].reshape(B2 * H, KC)
        acc = acc + jnp.dot(lhs, band_ref[kh],
                            preferred_element_type=jnp.float32)
    acc = jnp.maximum(acc + cbias_ref[...], 0.0)              # bias + ReLU

    # --- Relayout (2B, H, W*Cout) -> (2B, H*W*Cout) via cheap lane-aligned
    #     stores into VMEM scratch (no matmul / accumulator work per h).
    relu3 = acc.reshape(B2, H, WCout)
    for h in range(H):
        relu_ref[:, pl.ds(h * WCout, WCout)] = relu3[:, h, :]

    # --- Flatten + Linear as a SINGLE K = H*W*Cout matmul (one MXU stream).
    feats = jnp.dot(relu_ref[...], w2_ref[...],
                    preferred_element_type=jnp.float32) + fcb_ref[...]

    # --- torch.cat((f1, f2), dim=1) written directly: rows [0:B] are branch 1,
    #     rows [B:2B] are branch 2.
    o_ref[:, 0:hidden] = feats[0:B, :].astype(o_ref.dtype)
    o_ref[:, hidden:2 * hidden] = feats[B:B2, :].astype(o_ref.dtype)


# ----------------------- One-time weight preprocessing ------------------------

def prepare_siamese_params(conv_w, conv_b, fc_w, fc_b, H, W):
    """Preprocess backbone weights for the kernel.  Call ONCE and cache.

    NOTE: fc_w is (in_features, hidden), i.e. the TRANSPOSE of PyTorch
    nn.Linear.weight (which is (out, in)).  Transpose a torch state_dict
    weight before passing it here.
    """
    Cout, C, KH, KW = conv_w.shape
    hidden = fc_w.shape[1]
    Wp2 = W + KW - 1

    # band[kh, wp*C+ci, w*Cout+co] = conv_w[co, ci, kh, wp-w] (0 outside band).
    wkt = jnp.transpose(conv_w, (2, 3, 1, 0))                      # (KH, KW, C, Cout)
    wp = jnp.arange(Wp2)[:, None]
    wo = jnp.arange(W)[None, :]
    kw = wp - wo                                                   # (Wp2, W)
    valid = ((kw >= 0) & (kw < KW)).astype(conv_w.dtype)
    band4 = wkt[:, jnp.clip(kw, 0, KW - 1)]                        # (KH, Wp2, W, C, Cout)
    band4 = band4 * valid[None, :, :, None, None]
    band = jnp.transpose(band4, (0, 1, 3, 2, 4)).reshape(KH, Wp2 * C, W * Cout)

    cbias = jnp.tile(conv_b, W).reshape(1, W * Cout)               # per-column conv bias

    # fc_w rows are in PyTorch NCHW-flatten order (co, h, w); permute once to the
    # kernel's (h, w, co) row order so no activation transpose is ever needed.
    w2 = jnp.transpose(fc_w.reshape(Cout, H, W, hidden), (1, 2, 0, 3))
    w2 = w2.reshape(H * W * Cout, hidden)
    fcb = fc_b.reshape(1, hidden)
    return band, cbias, w2, fcb


# ------------------------------ Hot forward path ------------------------------

@jax.jit
def _siamese_forward_impl(x1, x2, band, cbias, w2, fcb):
    B, C, H, W = x1.shape
    KH, KC, WCout = band.shape
    hidden = w2.shape[1]
    Wp2 = KC // C
    Hp2 = H + KH - 1
    B2 = 2 * B

    # Input layout: stack branches on batch, NCHW -> padded (2B, H+2, (W+2)*C).
    x = jnp.concatenate([x1, x2], axis=0)                          # (2B, C, H, W)
    xn = jnp.transpose(x, (0, 2, 3, 1))                            # (2B, H, W, C)
    ph, pw = KH - 1, Wp2 - W
    xp = jnp.pad(xn, ((0, 0), (ph // 2, ph - ph // 2),
                      (pw // 2, pw - pw // 2), (0, 0)))
    xs = xp.reshape(B2, Hp2, Wp2 * C)

    # Single-step kernel: both branches + both layers fused, weights loaded once.
    # TODO(synk): on v7x a 2-way "parallel" grid over batch halves could use the
    # second TensorCore, but at this size the duplicated weight DMA is a net loss.
    return pl.pallas_call(
        _siamese_backbone_kernel,
        out_shape=jax.ShapeDtypeStruct((B, 2 * hidden), x1.dtype),
        grid=(1,),
        in_specs=[
            pl.BlockSpec((B2, Hp2, Wp2 * C), lambda i: (0, 0, 0)),
            pl.BlockSpec((KH, Wp2 * C, WCout), lambda i: (0, 0, 0)),
            pl.BlockSpec((1, WCout), lambda i: (0, 0)),
            pl.BlockSpec((H * WCout, hidden), lambda i: (0, 0)),
            pl.BlockSpec((1, hidden), lambda i: (0, 0)),
        ],
        out_specs=pl.BlockSpec((B, 2 * hidden), lambda i: (0, 0)),
        scratch_shapes=[pltpu.VMEM((B2, H * WCout), jnp.float32)],
        compiler_params=pltpu.CompilerParams(
            dimension_semantics=("arbitrary",)),
    )(xs, band, cbias, w2, fcb)


def siamese_forward(x, prepped_params):
    """x: (x1, x2) each (B, C, H, W) NCHW.  Returns (B, 2*hidden)."""
    if not isinstance(x, (list, tuple)):
        raise TypeError("The input must be a list or a tuple")
    if len(x) != 2:
        raise ValueError("The input must have two elements")
    band, cbias, w2, fcb = prepped_params
    return _siamese_forward_impl(x[0], x[1], band, cbias, w2, fcb)


# ------------------------------ Parameter init --------------------------------

def init_params(key, C_in=4, C_out=8, H=16, W=16, hidden=32):
    k1, k2, k3, k4 = jax.random.split(key, 4)
    conv_w = jax.random.normal(k1, (C_out, C_in, 3, 3), jnp.float32) * 0.1
    conv_b = jax.random.normal(k2, (C_out,), jnp.float32) * 0.1
    # (in_features, hidden) — transpose of torch nn.Linear.weight.
    fc_w = jax.random.normal(k3, (C_out * H * W, hidden), jnp.float32) * 0.02
    fc_b = jax.random.normal(k4, (hidden,), jnp.float32) * 0.02
    return conv_w, conv_b, fc_w, fc_b


# ----------------------------------- Main --------------------------------------

if __name__ == "__main__":
    B, C, H, W, hidden = 2, 4, 16, 16, 32
    key = jax.random.PRNGKey(0)
    kx1, kx2, kp = jax.random.split(key, 3)
    x1 = jax.random.normal(kx1, (B, C, H, W), jnp.float32)
    x2 = jax.random.normal(kx2, (B, C, H, W), jnp.float32)
    params = init_params(kp, C, 8, H, W, hidden)

    # One-time prep (cached device arrays) — kept OUT of the per-call hot path.
    prepped = prepare_siamese_params(*params, H=H, W=W)
    prepped = jax.block_until_ready(prepped)

    out = siamese_forward((x1, x2), prepped)
    out = jax.block_until_ready(out)
    assert out.shape == (B, 2 * hidden), out.shape

    # Cross-check against a pure-JAX reference (conv via lax + dense), f32/HIGHEST.
    def ref_once(x):
        conv_w, conv_b, fc_w, fc_b = params
        y = lax.conv_general_dilated(
            x, conv_w, window_strides=(1, 1), padding="SAME",
            dimension_numbers=("NCHW", "OIHW", "NCHW"),
            precision=lax.Precision.HIGHEST)
        y = jnp.maximum(y + conv_b[None, :, None, None], 0.0)
        y = y.reshape(x.shape[0], -1)
        return jnp.dot(y, fc_w, precision=lax.Precision.HIGHEST) + fc_b

    ref = jnp.concatenate([ref_once(x1), ref_once(x2)], axis=1)
    assert jnp.allclose(out, ref, atol=1e-3, rtol=1e-3), float(
        jnp.max(jnp.abs(out - ref)))

    print("KERNEL_OK")
</pallas_src>

<mosaic_0001>
module attributes {stable_mosaic.version = 11 : i64} {
  func.func @_siamese_backbone_kernel(%arg0: i32, %arg1: memref<4x18x72xf32, #tpu.memory_space<vmem>>, %arg2: memref<3x72x128xf32, #tpu.memory_space<vmem>>, %arg3: memref<1x128xf32, #tpu.memory_space<vmem>>, %arg4: memref<2048x32xf32, #tpu.memory_space<vmem>>, %arg5: memref<1x32xf32, #tpu.memory_space<vmem>>, %arg6: memref<2x64xf32, #tpu.memory_space<vmem>>, %arg7: memref<4x2048xf32, #tpu.memory_space<vmem>>) attributes {dimension_semantics = [#tpu.dimension_semantics<arbitrary>], iteration_bounds = array<i64: 1>, scalar_prefetch = 0 : i64, scratch_operands = 1 : i64, tpu.core_type = #tpu.core_type<tc>, window_params = [{pipeline_mode = #tpu.pipeline_mode<synchronous>, transform_indices = @transform_0, window_bounds = array<i64: 4, 18, 72>}, {pipeline_mode = #tpu.pipeline_mode<synchronous>, transform_indices = @transform_1, window_bounds = array<i64: 3, 72, 128>}, {pipeline_mode = #tpu.pipeline_mode<synchronous>, transform_indices = @transform_2, window_bounds = array<i64: 1, 128>}, {pipeline_mode = #tpu.pipeline_mode<synchronous>, transform_indices = @transform_3, window_bounds = array<i64: 2048, 32>}, {pipeline_mode = #tpu.pipeline_mode<synchronous>, transform_indices = @transform_4, window_bounds = array<i64: 1, 32>}, {pipeline_mode = #tpu.pipeline_mode<synchronous>, transform_indices = @transform_5, window_bounds = array<i64: 2, 64>}]} {
    %cst = arith.constant 0.000000e+00 : f32
    %0 = vector.broadcast %cst : f32 to vector<64x128xf32>
    %c0 = arith.constant 0 : index
    %c0_0 = arith.constant 0 : index
    %c0_1 = arith.constant 0 : index
    %1 = vector.load %arg1[%c0, %c0_0, %c0_1] : memref<4x18x72xf32, #tpu.memory_space<vmem>>, vector<4x16x72xf32>
    %2 = vector.shape_cast %1 : vector<4x16x72xf32> to vector<64x72xf32>
    %c0_2 = arith.constant 0 : index
    %c0_3 = arith.constant 0 : index
    %c0_4 = arith.constant 0 : index
    %3 = vector.load %arg2[%c0_2, %c0_3, %c0_4] : memref<3x72x128xf32, #tpu.memory_space<vmem>>, vector<1x72x128xf32>
    %4 = vector.shape_cast %3 : vector<1x72x128xf32> to vector<72x128xf32>
    %cst_5 = arith.constant dense<0.000000e+00> : vector<64x128xf32>
    %5 = tpu.matmul %2, %4, %cst_5 {dimension_numbers = #tpu.dot_dimension_numbers<[1], [0], [0], [1], [0, 0, 1, 1], [], []>} : vector<64x72xf32>, vector<72x128xf32>, vector<64x128xf32> -> vector<64x128xf32>
    %6 = arith.addf %0, %5 : vector<64x128xf32>
    %c0_6 = arith.constant 0 : index
    %c1 = arith.constant 1 : index
    %c0_7 = arith.constant 0 : index
    %7 = vector.load %arg1[%c0_6, %c1, %c0_7] : memref<4x18x72xf32, #tpu.memory_space<vmem>>, vector<4x16x72xf32>
    %8 = vector.shape_cast %7 : vector<4x16x72xf32> to vector<64x72xf32>
    %c1_8 = arith.constant 1 : index
    %c0_9 = arith.constant 0 : index
    %c0_10 = arith.constant 0 : index
    %9 = vector.load %arg2[%c1_8, %c0_9, %c0_10] : memref<3x72x128xf32, #tpu.memory_space<vmem>>, vector<1x72x128xf32>
    %10 = vector.shape_cast %9 : vector<1x72x128xf32> to vector<72x128xf32>
    %cst_11 = arith.constant dense<0.000000e+00> : vector<64x128xf32>
    %11 = tpu.matmul %8, %10, %cst_11 {dimension_numbers = #tpu.dot_dimension_numbers<[1], [0], [0], [1], [0, 0, 1, 1], [], []>} : vector<64x72xf32>, vector<72x128xf32>, vector<64x128xf32> -> vector<64x128xf32>
    %12 = arith.addf %6, %11 : vector<64x128xf32>
    %c0_12 = arith.constant 0 : index
    %c2 = arith.constant 2 : index
    %c0_13 = arith.constant 0 : index
    %13 = vector.load %arg1[%c0_12, %c2, %c0_13] : memref<4x18x72xf32, #tpu.memory_space<vmem>>, vector<4x16x72xf32>
    %14 = vector.shape_cast %13 : vector<4x16x72xf32> to vector<64x72xf32>
    %c2_14 = arith.constant 2 : index
    %c0_15 = arith.constant 0 : index
    %c0_16 = arith.constant 0 : index
    %15 = vector.load %arg2[%c2_14, %c0_15, %c0_16] : memref<3x72x128xf32, #tpu.memory_space<vmem>>, vector<1x72x128xf32>
    %16 = vector.shape_cast %15 : vector<1x72x128xf32> to vector<72x128xf32>
    %cst_17 = arith.constant dense<0.000000e+00> : vector<64x128xf32>
    %17 = tpu.matmul %14, %16, %cst_17 {dimension_numbers = #tpu.dot_dimension_numbers<[1], [0], [0], [1], [0, 0, 1, 1], [], []>} : vector<64x72xf32>, vector<72x128xf32>, vector<64x128xf32> -> vector<64x128xf32>
    %18 = arith.addf %12, %17 : vector<64x128xf32>
    %c0_18 = arith.constant 0 : index
    %c0_19 = arith.constant 0 : index
    %19 = vector.load %arg3[%c0_18, %c0_19] : memref<1x128xf32, #tpu.memory_space<vmem>>, vector<1x128xf32>
    %20 = vector.broadcast %19 : vector<1x128xf32> to vector<64x128xf32>
    %21 = arith.addf %18, %20 : vector<64x128xf32>
    %cst_20 = arith.constant 0.000000e+00 : f32
    %22 = vector.broadcast %cst_20 : f32 to vector<64x128xf32>
    %23 = arith.maximumf %21, %22 : vector<64x128xf32>
    %24 = vector.shape_cast %23 : vector<64x128xf32> to vector<4x16x128xf32>
    %25 = vector.extract_strided_slice %24 {offsets = [0, 0, 0], sizes = [4, 1, 128], strides = [1, 1, 1]} : vector<4x16x128xf32> to vector<4x1x128xf32>
    %26 = vector.shape_cast %25 : vector<4x1x128xf32> to vector<4x128xf32>
    %c0_21 = arith.constant 0 : index
    %c0_22 = arith.constant 0 : index
    %27 = vector.load %arg7[%c0_21, %c0_22] : memref<4x2048xf32, #tpu.memory_space<vmem>>, vector<4x128xf32>
    tpu.vector_store %arg7[%c0_21, %c0_22], %26 {strides = array<i32>} : memref<4x2048xf32, #tpu.memory_space<vmem>>, vector<4x128xf32>,
    %28 = vector.extract_strided_slice %24 {offsets = [0, 1, 0], sizes = [4, 1, 128], strides = [1, 1, 1]} : vector<4x16x128xf32> to vector<4x1x128xf32>
    %29 = vector.shape_cast %28 : vector<4x1x128xf32> to vector<4x128xf32>
    %c0_23 = arith.constant 0 : index
    %c128 = arith.constant 128 : index
    %30 = vector.load %arg7[%c0_23, %c128] : memref<4x2048xf32, #tpu.memory_space<vmem>>, vector<4x128xf32>
    tpu.vector_store %arg7[%c0_23, %c128], %29 {strides = array<i32>} : memref<4x2048xf32, #tpu.memory_space<vmem>>, vector<4x128xf32>,
    %31 = vector.extract_strided_slice %24 {offsets = [0, 2, 0], sizes = [4, 1, 128], strides = [1, 1, 1]} : vector<4x16x128xf32> to vector<4x1x128xf32>
    %32 = vector.shape_cast %31 : vector<4x1x128xf32> to vector<4x128xf32>
    %c0_24 = arith.constant 0 : index
    %c256 = arith.constant 256 : index
    %33 = vector.load %arg7[%c0_24, %c256] : memref<4x2048xf32, #tpu.memory_space<vmem>>, vector<4x128xf32>
    tpu.vector_store %arg7[%c0_24, %c256], %32 {strides = array<i32>} : memref<4x2048xf32, #tpu.memory_space<vmem>>, vector<4x128xf32>,
    %34 = vector.extract_strided_slice %24 {offsets = [0, 3, 0], sizes = [4, 1, 128], strides = [1, 1, 1]} : vector<4x16x128xf32> to vector<4x1x128xf32>
    %35 = vector.shape_cast %34 : vector<4x1x128xf32> to vector<4x128xf32>
    %c0_25 = arith.constant 0 : index
    %c384 = arith.constant 384 : index
    %36 = vector.load %arg7[%c0_25, %c384] : memref<4x2048xf32, #tpu.memory_space<vmem>>, vector<4x128xf32>
    tpu.vector_store %arg7[%c0_25, %c384], %35 {strides = array<i32>} : memref<4x2048xf32, #tpu.memory_space<vmem>>, vector<4x128xf32>,
    %37 = vector.extract_strided_slice %24 {offsets = [0, 4, 0], sizes = [4, 1, 128], strides = [1, 1, 1]} : vector<4x16x128xf32> to vector<4x1x128xf32>
    %38 = vector.shape_cast %37 : vector<4x1x128xf32> to vector<4x128xf32>
    %c0_26 = arith.constant 0 : index
    %c512 = arith.constant 512 : index
    %39 = vector.load %arg7[%c0_26, %c512] : memref<4x2048xf32, #tpu.memory_space<vmem>>, vector<4x128xf32>
    tpu.vector_store %arg7[%c0_26, %c512], %38 {strides = array<i32>} : memref<4x2048xf32, #tpu.memory_space<vmem>>, vector<4x128xf32>,
    %40 = vector.extract_strided_slice %24 {offsets = [0, 5, 0], sizes = [4, 1, 128], strides = [1, 1, 1]} : vector<4x16x128xf32> to vector<4x1x128xf32>
    %41 = vector.shape_cast %40 : vector<4x1x128xf32> to vector<4x128xf32>
    %c0_27 = arith.constant 0 : index
    %c640 = arith.constant 640 : index
    %42 = vector.load %arg7[%c0_27, %c640] : memref<4x2048xf32, #tpu.memory_space<vmem>>, vector<4x128xf32>
    tpu.vector_store %arg7[%c0_27, %c640], %41 {strides = array<i32>} : memref<4x2048xf32, #tpu.memory_space<vmem>>, vector<4x128xf32>,
    %43 = vector.extract_strided_slice %24 {offsets = [0, 6, 0], sizes = [4, 1, 128], strides = [1, 1, 1]} : vector<4x16x128xf32> to vector<4x1x128xf32>
    %44 = vector.shape_cast %43 : vector<4x1x128xf32> to vector<4x128xf32>
    %c0_28 = arith.constant 0 : index
    %c768 = arith.constant 768 : index
    %45 = vector.load %arg7[%c0_28, %c768] : memref<4x2048xf32, #tpu.memory_space<vmem>>, vector<4x128xf32>
    tpu.vector_store %arg7[%c0_28, %c768], %44 {strides = array<i32>} : memref<4x2048xf32, #tpu.memory_space<vmem>>, vector<4x128xf32>,
    %46 = vector.extract_strided_slice %24 {offsets = [0, 7, 0], sizes = [4, 1, 128], strides = [1, 1, 1]} : vector<4x16x128xf32> to vector<4x1x128xf32>
    %47 = vector.shape_cast %46 : vector<4x1x128xf32> to vector<4x128xf32>
    %c0_29 = arith.constant 0 : index
    %c896 = arith.constant 896 : index
    %48 = vector.load %arg7[%c0_29, %c896] : memref<4x2048xf32, #tpu.memory_space<vmem>>, vector<4x128xf32>
    tpu.vector_store %arg7[%c0_29, %c896], %47 {strides = array<i32>} : memref<4x2048xf32, #tpu.memory_space<vmem>>, vector<4x128xf32>,
    %49 = vector.extract_strided_slice %24 {offsets = [0, 8, 0], sizes = [4, 1, 128], strides = [1, 1, 1]} : vector<4x16x128xf32> to vector<4x1x128xf32>
    %50 = vector.shape_cast %49 : vector<4x1x128xf32> to vector<4x128xf32>
    %c0_30 = arith.constant 0 : index
    %c1024 = arith.constant 1024 : index
    %51 = vector.load %arg7[%c0_30, %c1024] : memref<4x2048xf32, #tpu.memory_space<vmem>>, vector<4x128xf32>
    tpu.vector_store %arg7[%c0_30, %c1024], %50 {strides = array<i32>} : memref<4x2048xf32, #tpu.memory_space<vmem>>, vector<4x128xf32>,
    %52 = vector.extract_strided_slice %24 {offsets = [0, 9, 0], sizes = [4, 1, 128], strides = [1, 1, 1]} : vector<4x16x128xf32> to vector<4x1x128xf32>
    %53 = vector.shape_cast %52 : vector<4x1x128xf32> to vector<4x128xf32>
    %c0_31 = arith.constant 0 : index
    %c1152 = arith.constant 1152 : index
    %54 = vector.load %arg7[%c0_31, %c1152] : memref<4x2048xf32, #tpu.memory_space<vmem>>, vector<4x128xf32>
    tpu.vector_store %arg7[%c0_31, %c1152], %53 {strides = array<i32>} : memref<4x2048xf32, #tpu.memory_space<vmem>>, vector<4x128xf32>,
    %55 = vector.extract_strided_slice %24 {offsets = [0, 10, 0], sizes = [4, 1, 128], strides = [1, 1, 1]} : vector<4x16x128xf32> to vector<4x1x128xf32>
    %56 = vector.shape_cast %55 : vector<4x1x128xf32> to vector<4x128xf32>
    %c0_32 = arith.constant 0 : index
    %c1280 = arith.constant 1280 : index
    %57 = vector.load %arg7[%c0_32, %c1280] : memref<4x2048xf32, #tpu.memory_space<vmem>>, vector<4x128xf32>
    tpu.vector_store %arg7[%c0_32, %c1280], %56 {strides = array<i32>} : memref<4x2048xf32, #tpu.memory_space<vmem>>, vector<4x128xf32>,
    %58 = vector.extract_strided_slice %24 {offsets = [0, 11, 0], sizes = [4, 1, 128], strides = [1, 1, 1]} : vector<4x16x128xf32> to vector<4x1x128xf32>
    %59 = vector.shape_cast %58 : vector<4x1x128xf32> to vector<4x128xf32>
    %c0_33 = arith.constant 0 : index
    %c1408 = arith.constant 1408 : index
    %60 = vector.load %arg7[%c0_33, %c1408] : memref<4x2048xf32, #tpu.memory_space<vmem>>, vector<4x128xf32>
    tpu.vector_store %arg7[%c0_33, %c1408], %59 {strides = array<i32>} : memref<4x2048xf32, #tpu.memory_space<vmem>>, vector<4x128xf32>,
    %61 = vector.extract_strided_slice %24 {offsets = [0, 12, 0], sizes = [4, 1, 128], strides = [1, 1, 1]} : vector<4x16x128xf32> to vector<4x1x128xf32>
    %62 = vector.shape_cast %61 : vector<4x1x128xf32> to vector<4x128xf32>
    %c0_34 = arith.constant 0 : index
    %c1536 = arith.constant 1536 : index
    %63 = vector.load %arg7[%c0_34, %c1536] : memref<4x2048xf32, #tpu.memory_space<vmem>>, vector<4x128xf32>
    tpu.vector_store %arg7[%c0_34, %c1536], %62 {strides = array<i32>} : memref<4x2048xf32, #tpu.memory_space<vmem>>, vector<4x128xf32>,
    %64 = vector.extract_strided_slice %24 {offsets = [0, 13, 0], sizes = [4, 1, 128], strides = [1, 1, 1]} : vector<4x16x128xf32> to vector<4x1x128xf32>
    %65 = vector.shape_cast %64 : vector<4x1x128xf32> to vector<4x128xf32>
    %c0_35 = arith.constant 0 : index
    %c1664 = arith.constant 1664 : index
    %66 = vector.load %arg7[%c0_35, %c1664] : memref<4x2048xf32, #tpu.memory_space<vmem>>, vector<4x128xf32>
    tpu.vector_store %arg7[%c0_35, %c1664], %65 {strides = array<i32>} : memref<4x2048xf32, #tpu.memory_space<vmem>>, vector<4x128xf32>,
    %67 = vector.extract_strided_slice %24 {offsets = [0, 14, 0], sizes = [4, 1, 128], strides = [1, 1, 1]} : vector<4x16x128xf32> to vector<4x1x128xf32>
    %68 = vector.shape_cast %67 : vector<4x1x128xf32> to vector<4x128xf32>
    %c0_36 = arith.constant 0 : index
    %c1792 = arith.constant 1792 : index
    %69 = vector.load %arg7[%c0_36, %c1792] : memref<4x2048xf32, #tpu.memory_space<vmem>>, vector<4x128xf32>
    tpu.vector_store %arg7[%c0_36, %c1792], %68 {strides = array<i32>} : memref<4x2048xf32, #tpu.memory_space<vmem>>, vector<4x128xf32>,
    %70 = vector.extract_strided_slice %24 {offsets = [0, 15, 0], sizes = [4, 1, 128], strides = [1, 1, 1]} : vector<4x16x128xf32> to vector<4x1x128xf32>
    %71 = vector.shape_cast %70 : vector<4x1x128xf32> to vector<4x128xf32>
    %c0_37 = arith.constant 0 : index
    %c1920 = arith.constant 1920 : index
    %72 = vector.load %arg7[%c0_37, %c1920] : memref<4x2048xf32, #tpu.memory_space<vmem>>, vector<4x128xf32>
    tpu.vector_store %arg7[%c0_37, %c1920], %71 {strides = array<i32>} : memref<4x2048xf32, #tpu.memory_space<vmem>>, vector<4x128xf32>,
    %c0_38 = arith.constant 0 : index
    %c0_39 = arith.constant 0 : index
    %73 = vector.load %arg7[%c0_38, %c0_39] : memref<4x2048xf32, #tpu.memory_space<vmem>>, vector<4x2048xf32>
    %c0_40 = arith.constant 0 : index
    %c0_41 = arith.constant 0 : index
    %74 = vector.load %arg4[%c0_40, %c0_41] : memref<2048x32xf32, #tpu.memory_space<vmem>>, vector<2048x32xf32>
    %cst_42 = arith.constant dense<0.000000e+00> : vector<4x32xf32>
    %75 = tpu.matmul %73, %74, %cst_42 {dimension_numbers = #tpu.dot_dimension_numbers<[1], [0], [0], [1], [0, 0, 1, 1], [], []>} : vector<4x2048xf32>, vector<2048x32xf32>, vector<4x32xf32> -> vector<4x32xf32>
    %c0_43 = arith.constant 0 : index
    %c0_44 = arith.constant 0 : index
    %76 = vector.load %arg5[%c0_43, %c0_44] : memref<1x32xf32, #tpu.memory_space<vmem>>, vector<1x32xf32>
    %77 = vector.broadcast %76 : vector<1x32xf32> to vector<4x32xf32>
    %78 = arith.addf %75, %77 : vector<4x32xf32>
    %79 = vector.extract_strided_slice %78 {offsets = [0, 0], sizes = [2, 32], strides = [1, 1]} : vector<4x32xf32> to vector<2x32xf32>
    %c0_45 = arith.constant 0 : index
    %c0_46 = arith.constant 0 : index
    %80 = vector.load %arg6[%c0_45, %c0_46] : memref<2x64xf32, #tpu.memory_space<vmem>>, vector<2x32xf32>
    tpu.vector_store %arg6[%c0_45, %c0_46], %79 {strides = array<i32>} : memref<2x64xf32, #tpu.memory_space<vmem>>, vector<2x32xf32>,
    %81 = vector.extract_strided_slice %78 {offsets = [2, 0], sizes = [2, 32], strides = [1, 1]} : vector<4x32xf32> to vector<2x32xf32>
    %c0_47 = arith.constant 0 : index
    %c32 = arith.constant 32 : index
    %82 = vector.load %arg6[%c0_47, %c32] : memref<2x64xf32, #tpu.memory_space<vmem>>, vector<2x32xf32>
    tpu.vector_store %arg6[%c0_47, %c32], %81 {strides = array<i32>} : memref<2x64xf32, #tpu.memory_space<vmem>>, vector<2x32xf32>,
    return
  }
  func.func @transform_0(%arg0: i32) -> (i32, i32, i32) {
    %c0_i32 = arith.constant 0 : i32
    %c0_i32_0 = arith.constant 0 : i32
    %c0_i32_1 = arith.constant 0 : i32
    %c0_i32_2 = arith.constant 0 : i32
    return %c0_i32, %c0_i32_0, %c0_i32_1 : i32, i32, i32
  }
  func.func @transform_1(%arg0: i32) -> (i32, i32, i32) {
    %c0_i32 = arith.constant 0 : i32
    %c0_i32_0 = arith.constant 0 : i32
    %c0_i32_1 = arith.constant 0 : i32
    %c0_i32_2 = arith.constant 0 : i32
    return %c0_i32, %c0_i32_0, %c0_i32_1 : i32, i32, i32
  }
  func.func @transform_2(%arg0: i32) -> (i32, i32) {
    %c0_i32 = arith.constant 0 : i32
    %c0_i32_0 = arith.constant 0 : i32
    %c0_i32_1 = arith.constant 0 : i32
    return %c0_i32, %c0_i32_0 : i32, i32
  }
  func.func @transform_3(%arg0: i32) -> (i32, i32) {
    %c0_i32 = arith.constant 0 : i32
    %c0_i32_0 = arith.constant 0 : i32
    %c0_i32_1 = arith.constant 0 : i32
    return %c0_i32, %c0_i32_0 : i32, i32
  }
  func.func @transform_4(%arg0: i32) -> (i32, i32) {
    %c0_i32 = arith.constant 0 : i32
    %c0_i32_0 = arith.constant 0 : i32
    %c0_i32_1 = arith.constant 0 : i32
    return %c0_i32, %c0_i32_0 : i32, i32
  }
  func.func @transform_5(%arg0: i32) -> (i32, i32) {
    %c0_i32 = arith.constant 0 : i32
    %c0_i32_0 = arith.constant 0 : i32
    %c0_i32_1 = arith.constant 0 : i32
    return %c0_i32, %c0_i32_0 : i32, i32
  }
}

</mosaic_0001>

<llo_original>
// kernel: _siamese_forward_impl.1
$region0: #{_siamese_forward_impl.1}
  #allocation0 [shape = 'u32[]', space=smem, size = 0x4, offset = 0x4, fixed_abs, tag = 'smem constant byte address 0x4 - core index']
  #allocation1 [shape = 'u32[72,128]{1,0:T(1,128)}', space=vmem, size = 0x9000, scoped, tag = 'internal scratch']
  #allocation2 [shape = 'f32[4,2048]{1,0:T(4,128)}', space=vmem, size = 0x8000, scoped, tag = 'scratch operand']
  %s0 = inlined_call_operand.vmem [shape: f32[4,18,72], index: 0, kind: input, shape index: {}]
  %s1 = inlined_call_operand.vmem [shape: f32[3,72,128], index: 1, kind: input, shape index: {}]
  %s2 = inlined_call_operand.vmem [shape: f32[1,128], index: 2, kind: input, shape index: {}]
  %s3 = inlined_call_operand.vmem [shape: f32[2048,32], index: 3, kind: input, shape index: {}]
  %s4 = inlined_call_operand.vmem [shape: f32[1,32], index: 4, kind: input, shape index: {}]
  %s5 = inlined_call_operand.hbm [shape: f32[2,64], index: 5, kind: output, shape index: {}]
  %s6 = sld [smem:[#allocation0]]
  $region30: #{_siamese_forward_impl.1} parent=0
    _
  %s8 = ssub.s32 1, %s6
  %s9 = scalar_select 0, %s8, %s6
  $region1: #{_siamese_forward_impl.1} parent=0
    #allocation3 [shape = 'u8[1024]{0}', space=vmem, size = 0x400, scoped, tag = 'output window, operand 0, single buffered']
    #allocation4 [shape = 's32[1]{0}', space=sflag, size = 0x4, scoped, tag = 'scoped memory for _siamese_forward_impl.1']
    %10 = vsyncpa [#allocation4], 0
    // Predicated region
    $region2: #{_siamese_forward_impl.1} parent=1 // pred_check
      _
    $region3: #{_siamese_forward_impl.1} parent=1 // pred_check_branch
      %12 = sbr.rel (0) target = $region5
    $region4: #{_siamese_forward_impl.1} parent=1 // pred_region
      _
    $region5: #{_siamese_forward_impl.1} parent=1 // pred_fallthru
      _
    // Predicated region
    $region6: #{_siamese_forward_impl.1} parent=1 // pred_check
      _
    $region7: #{_siamese_forward_impl.1} parent=1 // pred_check_branch
      %14 = sbr.rel (0) target = $region9
    $region8: #{_siamese_forward_impl.1} parent=1 // pred_region
      _
    $region9: #{_siamese_forward_impl.1} parent=1 // pred_fallthru
      _
    // Predicated region
    $region10: #{_siamese_forward_impl.1} parent=1 // pred_check
      _
    $region11: #{_siamese_forward_impl.1} parent=1 // pred_check_branch
      %16 = sbr.rel (0) target = $region13
    $region12: #{_siamese_forward_impl.1} parent=1 // pred_region
      _
    $region13: #{_siamese_forward_impl.1} parent=1 // pred_fallthru
      _
    // Predicated region
    $region14: #{_siamese_forward_impl.1} parent=1 // pred_check
      _
    $region15: #{_siamese_forward_impl.1} parent=1 // pred_check_branch
      %18 = sbr.rel (0) target = $region17
    $region16: #{_siamese_forward_impl.1} parent=1 // pred_region
      _
    $region17: #{_siamese_forward_impl.1} parent=1 // pred_fallthru
      _
    // Predicated region
    $region18: #{_siamese_forward_impl.1} parent=1 // pred_check
      _
    $region19: #{_siamese_forward_impl.1} parent=1 // pred_check_branch
      %20 = sbr.rel (0) target = $region21
    $region20: #{_siamese_forward_impl.1} parent=1 // pred_region
      _
    $region21: #{_siamese_forward_impl.1} parent=1 // pred_fallthru
      _
    %v21 = vld [vmem:[%s0] sm:$0xff]
    %v22 = vld [vmem:[%s0 + $0x8] sm:$0xff]
    %v23 = vld [vmem:[%s0 + $0x18] sm:$0xff]
    %v24 = vld [vmem:[%s0 + $0x20] sm:$0xff]
    %v25 = vld [vmem:[%s0 + $0x30] sm:$0xff]
    %v26 = vld [vmem:[%s0 + $0x38] sm:$0xff]
    %v27 = vld [vmem:[%s0 + $0x48] sm:$0xff]
    %v28 = vld [vmem:[%s0 + $0x50] sm:$0xff]
    %v29 = vld [vmem:[%s1] sm:$0xff]
    %v30 = vld [vmem:[%s1 + $0x8] sm:$0xff]
    %v31 = vld [vmem:[%s1 + $0x10] sm:$0xff]
    %v32 = vld [vmem:[%s1 + $0x18] sm:$0xff]
    %v33 = vld [vmem:[%s1 + $0x20] sm:$0xff]
    %v34 = vld [vmem:[%s1 + $0x28] sm:$0xff]
    %v35 = vld [vmem:[%s1 + $0x30] sm:$0xff]
    %v36 = vld [vmem:[%s1 + $0x38] sm:$0xff]
    %v37 = vld [vmem:[%s1 + $0x40] sm:$0xff]
    %v38 = vld [vmem:[%s0 + $0x1] sm:$0xff]
    %v39 = vld [vmem:[%s0 + $0x9] sm:$0xff]
    %v40 = vld [vmem:[%s0 + $0x19] sm:$0xff]
    %v41 = vld [vmem:[%s0 + $0x21] sm:$0xff]
    %v42 = vld [vmem:[%s0 + $0x31] sm:$0xff]
    %v43 = vld [vmem:[%s0 + $0x39] sm:$0xff]
    %v44 = vld [vmem:[%s0 + $0x49] sm:$0xff]
    %v45 = vld [vmem:[%s0 + $0x51] sm:$0xff]
    %s46 = scalar_lea.vmem %s1, 72
    %v47 = vld [vmem:[%s46] sm:$0xff]
    %v48 = vld [vmem:[%s46 + $0x8] sm:$0xff]
    %v49 = vld [vmem:[%s46 + $0x10] sm:$0xff]
    %v50 = vld [vmem:[%s46 + $0x18] sm:$0xff]
    %v51 = vld [vmem:[%s46 + $0x20] sm:$0xff]
    %v52 = vld [vmem:[%s46 + $0x28] sm:$0xff]
    %v53 = vld [vmem:[%s46 + $0x30] sm:$0xff]
    %v54 = vld [vmem:[%s46 + $0x38] sm:$0xff]
    %v55 = vld [vmem:[%s46 + $0x40] sm:$0xff]
    %vm56 = vcmask 588800
    %v58 = vsel %vm56, %v38, 0
    %v61 = vsel %vm56, %v39, 0
    %v64 = vsel %vm56, %v40, 0
    %v67 = vsel %vm56, %v41, 0
    %v70 = vsel %vm56, %v42, 0
    %v73 = vsel %vm56, %v43, 0
    %v76 = vsel %vm56, %v44, 0
    %v79 = vsel %vm56, %v45, 0
    %81 = vmatpush.msra.mxu0 0.0
    %82 = vmatpush.msra.mxu0 0.0
    %83 = vmatpush.msra.mxu0 0.0
    %84 = vmatpush.msra.mxu0 0.0
    %85 = vmatpush.msra.mxu0 0.0
    %86 = vmatpush.msra.mxu0 0.0
    %87 = vmatpush.msra.mxu0 0.0
    %88 = vmatpush.msra.mxu0 %v55
    %89 = vmatpush.msra.mxu0 %v54
    %90 = vmatpush.msra.mxu0 %v53
    %91 = vmatpush.msra.mxu0 %v52
    %92 = vmatpush.msra.mxu0 %v51
    %93 = vmatpush.msra.mxu0 %v50
    %94 = vmatpush.msra.mxu0 %v49
    %95 = vmatpush.msra.mxu0 %v48
    %96 = vmatpush.msra.mxu0 %v47
    %97 = vmatmul.f32.gmra.mxu0 %v58
    %v98 = vpop.f32.mrf.mxu0
    %v99 = vadd.f32 0.0, %v98
    %100 = vmatmul.f32.gmra.mxu0 %v61
    %v101 = vpop.f32.mrf.mxu0
    %v102 = vadd.f32 0.0, %v101
    %103 = vmatmul.f32.gmra.mxu0 %v64
    %v104 = vpop.f32.mrf.mxu0
    %v105 = vadd.f32 0.0, %v104
    %106 = vmatmul.f32.gmra.mxu0 %v67
    %v107 = vpop.f32.mrf.mxu0
    %v108 = vadd.f32 0.0, %v107
    %109 = vmatmul.f32.gmra.mxu0 %v70
    %v110 = vpop.f32.mrf.mxu0
    %v111 = vadd.f32 0.0, %v110
    %112 = vmatmul.f32.gmra.mxu0 %v73
    %v113 = vpop.f32.mrf.mxu0
    %v114 = vadd.f32 0.0, %v113
    %115 = vmatmul.f32.gmra.mxu0 %v76
    %v116 = vpop.f32.mrf.mxu0
    %v117 = vadd.f32 0.0, %v116
    %118 = vmatmul.f32.gmra.mxu0 %v79
    %v119 = vpop.f32.mrf.mxu0
    %v120 = vadd.f32 0.0, %v119
    %121 = vdwg.mxu0
    %v123 = vsel %vm56, %v21, 0
    %v126 = vsel %vm56, %v22, 0
    %v129 = vsel %vm56, %v23, 0
    %v132 = vsel %vm56, %v24, 0
    %v135 = vsel %vm56, %v25, 0
    %v138 = vsel %vm56, %v26, 0
    %v141 = vsel %vm56, %v27, 0
    %v144 = vsel %vm56, %v28, 0
    %146 = vmatpush.msra.mxu0 0.0
    %147 = vmatpush.msra.mxu0 0.0
    %148 = vmatpush.msra.mxu0 0.0
    %149 = vmatpush.msra.mxu0 0.0
    %150 = vmatpush.msra.mxu0 0.0
    %151 = vmatpush.msra.mxu0 0.0
    %152 = vmatpush.msra.mxu0 0.0
    %153 = vmatpush.msra.mxu0 %v37
    %154 = vmatpush.msra.mxu0 %v36
    %155 = vmatpush.msra.mxu0 %v35
    %156 = vmatpush.msra.mxu0 %v34
    %157 = vmatpush.msra.mxu0 %v33
    %158 = vmatpush.msra.mxu0 %v32
    %159 = vmatpush.msra.mxu0 %v31
    %160 = vmatpush.msra.mxu0 %v30
    %161 = vmatpush.msra.mxu0 %v29
    %162 = vmatmul.f32.gmra.mxu0 %v123
    %v163 = vpop.f32.mrf.mxu0
    %v164 = vadd.f32 %v99, %v163
    %165 = vmatmul.f32.gmra.mxu0 %v126
    %v166 = vpop.f32.mrf.mxu0
    %v167 = vadd.f32 %v102, %v166
    %168 = vmatmul.f32.gmra.mxu0 %v129
    %v169 = vpop.f32.mrf.mxu0
    %v170 = vadd.f32 %v105, %v169
    %171 = vmatmul.f32.gmra.mxu0 %v132
    %v172 = vpop.f32.mrf.mxu0
    %v173 = vadd.f32 %v108, %v172
    %174 = vmatmul.f32.gmra.mxu0 %v135
    %v175 = vpop.f32.mrf.mxu0
    %v176 = vadd.f32 %v111, %v175
    %177 = vmatmul.f32.gmra.mxu0 %v138
    %v178 = vpop.f32.mrf.mxu0
    %v179 = vadd.f32 %v114, %v178
    %180 = vmatmul.f32.gmra.mxu0 %v141
    %v181 = vpop.f32.mrf.mxu0
    %v182 = vadd.f32 %v117, %v181
    %183 = vmatmul.f32.gmra.mxu0 %v144
    %v184 = vpop.f32.mrf.mxu0
    %v185 = vadd.f32 %v120, %v184
    %186 = vdwg.mxu0
    %v187 = vld [vmem:[%s0 + $0x2] sm:$0xff]
    %v188 = vld [vmem:[%s0 + $0xa] sm:$0xff]
    %v189 = vld [vmem:[%s0 + $0x1a] sm:$0xff]
    %v190 = vld [vmem:[%s0 + $0x22] sm:$0xff]
    %v191 = vld [vmem:[%s0 + $0x32] sm:$0xff]
    %v192 = vld [vmem:[%s0 + $0x3a] sm:$0xff]
    %v193 = vld [vmem:[%s0 + $0x4a] sm:$0xff]
    %v194 = vld [vmem:[%s0 + $0x52] sm:$0xff]
    %s195 = scalar_lea.vmem %s1, 144
    %v196 = vld [vmem:[%s195] sm:$0xff]
    %v197 = vld [vmem:[%s195 + $0x8] sm:$0xff]
    %v198 = vld [vmem:[%s195 + $0x10] sm:$0xff]
    %v199 = vld [vmem:[%s195 + $0x18] sm:$0xff]
    %v200 = vld [vmem:[%s195 + $0x20] sm:$0xff]
    %v201 = vld [vmem:[%s195 + $0x28] sm:$0xff]
    %v202 = vld [vmem:[%s195 + $0x30] sm:$0xff]
    %v203 = vld [vmem:[%s195 + $0x38] sm:$0xff]
    %v204 = vld [vmem:[%s195 + $0x40] sm:$0xff]
    %v206 = vsel %vm56, %v187, 0
    %v209 = vsel %vm56, %v188, 0
    %v212 = vsel %vm56, %v189, 0
    %v215 = vsel %vm56, %v190, 0
    %v218 = vsel %vm56, %v191, 0
    %v221 = vsel %vm56, %v192, 0
    %v224 = vsel %vm56, %v193, 0
    %v227 = vsel %vm56, %v194, 0
    %229 = vmatpush.msra.mxu0 0.0
    %230 = vmatpush.msra.mxu0 0.0
    %231 = vmatpush.msra.mxu0 0.0
    %232 = vmatpush.msra.mxu0 0.0
    %233 = vmatpush.msra.mxu0 0.0
    %234 = vmatpush.msra.mxu0 0.0
    %235 = vmatpush.msra.mxu0 0.0
    %236 = vmatpush.msra.mxu0 %v204
    %237 = vmatpush.msra.mxu0 %v203
    %238 = vmatpush.msra.mxu0 %v202
    %239 = vmatpush.msra.mxu0 %v201
    %240 = vmatpush.msra.mxu0 %v200
    %241 = vmatpush.msra.mxu0 %v199
    %242 = vmatpush.msra.mxu0 %v198
    %243 = vmatpush.msra.mxu0 %v197
    %244 = vmatpush.msra.mxu0 %v196
    %245 = vmatmul.f32.gmra.mxu0 %v206
    %v246 = vpop.f32.mrf.mxu0
    %v247 = vadd.f32 0.0, %v246
    %248 = vmatmul.f32.gmra.mxu0 %v209
    %v249 = vpop.f32.mrf.mxu0
    %v250 = vadd.f32 0.0, %v249
    %251 = vmatmul.f32.gmra.mxu0 %v212
    %v252 = vpop.f32.mrf.mxu0
    %v253 = vadd.f32 0.0, %v252
    %254 = vmatmul.f32.gmra.mxu0 %v215
    %v255 = vpop.f32.mrf.mxu0
    %v256 = vadd.f32 0.0, %v255
    %257 = vmatmul.f32.gmra.mxu0 %v218
    %v258 = vpop.f32.mrf.mxu0
    %v259 = vadd.f32 0.0, %v258
    %260 = vmatmul.f32.gmra.mxu0 %v221
    %v261 = vpop.f32.mrf.mxu0
    %v262 = vadd.f32 0.0, %v261
    %263 = vmatmul.f32.gmra.mxu0 %v224
    %v264 = vpop.f32.mrf.mxu0
    %v265 = vadd.f32 0.0, %v264
    %266 = vmatmul.f32.gmra.mxu0 %v227
    %v267 = vpop.f32.mrf.mxu0
    %v268 = vadd.f32 0.0, %v267
    %269 = vdwg.mxu0
    %v270 = vadd.f32 %v164, %v247
    %v271 = vadd.f32 %v167, %v250
    %v272 = vadd.f32 %v170, %v253
    %v273 = vadd.f32 %v173, %v256
    %v274 = vadd.f32 %v176, %v259
    %v275 = vadd.f32 %v179, %v262
    %v276 = vadd.f32 %v182, %v265
    %v277 = vadd.f32 %v185, %v268
    %v278 = vld [vmem:[%s2] sm:$0x1]
    %v280 = vperm.slane %v278, 0
    %v282 = vadd.f32 %v270, %v280
    %v283 = vadd.f32 %v271, %v280
    %v284 = vadd.f32 %v272, %v280
    %v285 = vadd.f32 %v273, %v280
    %v286 = vadd.f32 %v274, %v280
    %v287 = vadd.f32 %v275, %v280
    %v288 = vadd.f32 %v276, %v280
    %v289 = vadd.f32 %v277, %v280
    %v290 = vmax.f32 %v282, 0.0
    %v291 = vmax.f32 %v283, 0.0
    %v292 = vmax.f32 %v284, 0.0
    %v293 = vmax.f32 %v285, 0.0
    %v294 = vmax.f32 %v286, 0.0
    %v295 = vmax.f32 %v287, 0.0
    %v296 = vmax.f32 %v288, 0.0
    %v297 = vmax.f32 %v289, 0.0
    %v302 = vrot.slane %v292, 7
    %vm303 = vcmask 1041409
    %v304 = vsel %vm303, %v302, %v290
    %vm305 = vcmask 1045509
    %v306 = vsel %vm305, %v302, %v304
    %v307 = vrot.slane %v294, 6
    %vm308 = vcmask 1042434
    %v309 = vsel %vm308, %v307, %v306
    %vm310 = vcmask 1046534
    %v311 = vsel %vm310, %v307, %v309
    %v312 = vrot.slane %v296, 5
    %vm313 = vcmask 1043459
    %v314 = vsel %vm313, %v312, %v311
    %vm315 = vcmask 1047559
    %v316 = vsel %vm315, %v312, %v314
    %318 = vst [vmem:[#allocation2] sm:$0xf] %v316
    %v319 = vrot.slane %v290, 1
    %v320 = vsel %vm303, %v292, %v319
    %v321 = vsel %vm305, %v292, %v320
    %v322 = vrot.slane %v294, 7
    %v323 = vsel %vm308, %v322, %v321
    %v324 = vsel %vm310, %v322, %v323
    %v325 = vrot.slane %v296, 6
    %v326 = vsel %vm313, %v325, %v324
    %v327 = vsel %vm315, %v325, %v326
    %329 = vst [vmem:[#allocation2 + $0x4] sm:$0xf] %v327
    %v330 = vrot.slane %v290, 2
    %v331 = vrot.slane %v292, 1
    %v332 = vsel %vm303, %v331, %v330
    %v333 = vsel %vm305, %v331, %v332
    %v334 = vsel %vm308, %v294, %v333
    %v335 = vsel %vm310, %v294, %v334
    %v336 = vrot.slane %v296, 7
    %v337 = vsel %vm313, %v336, %v335
    %v338 = vsel %vm315, %v336, %v337
    %340 = vst [vmem:[#allocation2 + $0x8] sm:$0xf] %v338
    %v341 = vrot.slane %v290, 3
    %v342 = vrot.slane %v292, 2
    %v343 = vsel %vm303, %v342, %v341
    %v344 = vsel %vm305, %v342, %v343
    %v345 = vrot.slane %v294, 1
    %v346 = vsel %vm308, %v345, %v344
    %v347 = vsel %vm310, %v345, %v346
    %v348 = vsel %vm313, %v296, %v347
    %v349 = vsel %vm315, %v296, %v348
    %351 = vst [vmem:[#allocation2 + $0xc] sm:$0xf] %v349
    %352 = vst.sshfl [vmem:[#allocation1] sm:$0xff pattern:$0x75316420] %v290
    %s353 = scalar_lea.vmem [#allocation1], 1
    %v354 = vld [vmem:[%s353] ss:$2 sm:$0xff]
    %355 = vst.sshfl [vmem:[#allocation1 + $0x10] sm:$0xff pattern:$0x75316420] %v292
    %s356 = scalar_lea.vmem [#allocation1], 17
    %v357 = vld [vmem:[%s356] ss:$2 sm:$0xff]
    %358 = vst.sshfl [vmem:[#allocation1 + $0x20] sm:$0xff pattern:$0x75316420] %v294
    %s359 = scalar_lea.vmem [#allocation1], 33
    %v360 = vld [vmem:[%s359] ss:$2 sm:$0xff]
    %361 = vst.sshfl [vmem:[#allocation1 + $0x30] sm:$0xff pattern:$0x75316420] %v296
    %s362 = scalar_lea.vmem [#allocation1], 49
    %v363 = vld [vmem:[%s362] ss:$2 sm:$0xff]
    %v364 = vrot.slane %v357, 7
    %v365 = vsel %vm303, %v364, %v354
    %v366 = vsel %vm305, %v364, %v365
    %v367 = vrot.slane %v360, 6
    %v368 = vsel %vm308, %v367, %v366
    %v369 = vsel %vm310, %v367, %v368
    %v370 = vrot.slane %v363, 5
    %v371 = vsel %vm313, %v370, %v369
    %v372 = vsel %vm315, %v370, %v371
    %374 = vst [vmem:[#allocation2 + $0x10] sm:$0xf] %v372
    %375 = vst.sshfl [vmem:[#allocation1] sm:$0xff pattern:$0x75316420] %v290
    %s376 = scalar_lea.vmem [#allocation1], 1
    %v377 = vld [vmem:[%s376] ss:$2 sm:$0xff]
    %378 = vst.sshfl [vmem:[#allocation1 + $0x10] sm:$0xff pattern:$0x75316420] %v292
    %s379 = scalar_lea.vmem [#allocation1], 17
    %v380 = vld [vmem:[%s379] ss:$2 sm:$0xff]
    %381 = vst.sshfl [vmem:[#allocation1 + $0x20] sm:$0xff pattern:$0x75316420] %v294
    %s382 = scalar_lea.vmem [#allocation1], 33
    %v383 = vld [vmem:[%s382] ss:$2 sm:$0xff]
    %384 = vst.sshfl [vmem:[#allocation1 + $0x30] sm:$0xff pattern:$0x75316420] %v296
    %s385 = scalar_lea.vmem [#allocation1], 49
    %v386 = vld [vmem:[%s385] ss:$2 sm:$0xff]
    %v387 = vrot.slane %v377, 1
    %v388 = vsel %vm303, %v380, %v387
    %v389 = vsel %vm305, %v380, %v388
    %v390 = vrot.slane %v383, 7
    %v391 = vsel %vm308, %v390, %v389
    %v392 = vsel %vm310, %v390, %v391
    %v393 = vrot.slane %v386, 6
    %v394 = vsel %vm313, %v393, %v392
    %v395 = vsel %vm315, %v393, %v394
    %397 = vst [vmem:[#allocation2 + $0x14] sm:$0xf] %v395
    %398 = vst.sshfl [vmem:[#allocation1] sm:$0xff pattern:$0x75316420] %v290
    %s399 = scalar_lea.vmem [#allocation1], 1
    %v400 = vld [vmem:[%s399] ss:$2 sm:$0xff]
    %401 = vst.sshfl [vmem:[#allocation1 + $0x10] sm:$0xff pattern:$0x75316420] %v292
    %s402 = scalar_lea.vmem [#allocation1], 17
    %v403 = vld [vmem:[%s402] ss:$2 sm:$0xff]
    %404 = vst.sshfl [vmem:[#allocation1 + $0x20] sm:$0xff pattern:$0x75316420] %v294
    %s405 = scalar_lea.vmem [#allocation1], 33
    %v406 = vld [vmem:[%s405] ss:$2 sm:$0xff]
    %407 = vst.sshfl [vmem:[#allocation1 + $0x30] sm:$0xff pattern:$0x75316420] %v296
    %s408 = scalar_lea.vmem [#allocation1], 49
    %v409 = vld [vmem:[%s408] ss:$2 sm:$0xff]
    %v410 = vrot.slane %v400, 2
    %v411 = vrot.slane %v403, 1
    %v412 = vsel %vm303, %v411, %v410
    %v413 = vsel %vm305, %v411, %v412
    %v414 = vsel %vm308, %v406, %v413
    %v415 = vsel %vm310, %v406, %v414
    %v416 = vrot.slane %v409, 7
    %v417 = vsel %vm313, %v416, %v415
    %v418 = vsel %vm315, %v416, %v417
    %420 = vst [vmem:[#allocation2 + $0x18] sm:$0xf] %v418
    %421 = vst.sshfl [vmem:[#allocation1] sm:$0xff pattern:$0x75316420] %v290
    %s422 = scalar_lea.vmem [#allocation1], 1
    %v423 = vld [vmem:[%s422] ss:$2 sm:$0xff]
    %424 = vst.sshfl [vmem:[#allocation1 + $0x10] sm:$0xff pattern:$0x75316420] %v292
    %s425 = scalar_lea.vmem [#allocation1], 17
    %v426 = vld [vmem:[%s425] ss:$2 sm:$0xff]
    %427 = vst.sshfl [vmem:[#allocation1 + $0x20] sm:$0xff pattern:$0x75316420] %v294
    %s428 = scalar_lea.vmem [#allocation1], 33
    %v429 = vld [vmem:[%s428] ss:$2 sm:$0xff]
    %430 = vst.sshfl [vmem:[#allocation1 + $0x30] sm:$0xff pattern:$0x75316420] %v296
    %s431 = scalar_lea.vmem [#allocation1], 49
    %v432 = vld [vmem:[%s431] ss:$2 sm:$0xff]
    %v433 = vrot.slane %v423, 3
    %v434 = vrot.slane %v426, 2
    %v435 = vsel %vm303, %v434, %v433
    %v436 = vsel %vm305, %v434, %v435
    %v437 = vrot.slane %v429, 1
    %v438 = vsel %vm308, %v437, %v436
    %v439 = vsel %vm310, %v437, %v438
    %v440 = vsel %vm313, %v432, %v439
    %v441 = vsel %vm315, %v432, %v440
    %443 = vst [vmem:[#allocation2 + $0x1c] sm:$0xf] %v441
    %v448 = vrot.slane %v293, 7
    %v449 = vsel %vm303, %v448, %v291
    %v450 = vsel %vm305, %v448, %v449
    %v451 = vrot.slane %v295, 6
    %v452 = vsel %vm308, %v451, %v450
    %v453 = vsel %vm310, %v451, %v452
    %v454 = vrot.slane %v297, 5
    %v455 = vsel %vm313, %v454, %v453
    %v456 = vsel %vm315, %v454, %v455
    %458 = vst [vmem:[#allocation2 + $0x20] sm:$0xf] %v456
    %v459 = vrot.slane %v291, 1
    %v460 = vsel %vm303, %v293, %v459
    %v461 = vsel %vm305, %v293, %v460
    %v462 = vrot.slane %v295, 7
    %v463 = vsel %vm308, %v462, %v461
    %v464 = vsel %vm310, %v462, %v463
    %v465 = vrot.slane %v297, 6
    %v466 = vsel %vm313, %v465, %v464
    %v467 = vsel %vm315, %v465, %v466
    %469 = vst [vmem:[#allocation2 + $0x24] sm:$0xf] %v467
    %v470 = vrot.slane %v291, 2
    %v471 = vrot.slane %v293, 1
    %v472 = vsel %vm303, %v471, %v470
    %v473 = vsel %vm305, %v471, %v472
    %v474 = vsel %vm308, %v295, %v473
    %v475 = vsel %vm310, %v295, %v474
    %v476 = vrot.slane %v297, 7
    %v477 = vsel %vm313, %v476, %v475
    %v478 = vsel %vm315, %v476, %v477
    %480 = vst [vmem:[#allocation2 + $0x28] sm:$0xf] %v478
    %v481 = vrot.slane %v291, 3
    %v482 = vrot.slane %v293, 2
    %v483 = vsel %vm303, %v482, %v481
    %v484 = vsel %vm305, %v482, %v483
    %v485 = vrot.slane %v295, 1
    %v486 = vsel %vm308, %v485, %v484
    %v487 = vsel %vm310, %v485, %v486
    %v488 = vsel %vm313, %v297, %v487
    %v489 = vsel %vm315, %v297, %v488
    %491 = vst [vmem:[#allocation2 + $0x2c] sm:$0xf] %v489
    %492 = vst.sshfl [vmem:[#allocation1] sm:$0xff pattern:$0x75316420] %v291
    %s493 = scalar_lea.vmem [#allocation1], 1
    %v494 = vld [vmem:[%s493] ss:$2 sm:$0xff]
    %495 = vst.sshfl [vmem:[#allocation1 + $0x10] sm:$0xff pattern:$0x75316420] %v293
    %s496 = scalar_lea.vmem [#allocation1], 17
    %v497 = vld [vmem:[%s496] ss:$2 sm:$0xff]
    %498 = vst.sshfl [vmem:[#allocation1 + $0x20] sm:$0xff pattern:$0x75316420] %v295
    %s499 = scalar_lea.vmem [#allocation1], 33
    %v500 = vld [vmem:[%s499] ss:$2 sm:$0xff]
    %501 = vst.sshfl [vmem:[#allocation1 + $0x30] sm:$0xff pattern:$0x75316420] %v297
    %s502 = scalar_lea.vmem [#allocation1], 49
    %v503 = vld [vmem:[%s502] ss:$2 sm:$0xff]
    %v504 = vrot.slane %v497, 7
    %v505 = vsel %vm303, %v504, %v494
    %v506 = vsel %vm305, %v504, %v505
    %v507 = vrot.slane %v500, 6
    %v508 = vsel %vm308, %v507, %v506
    %v509 = vsel %vm310, %v507, %v508
    %v510 = vrot.slane %v503, 5
    %v511 = vsel %vm313, %v510, %v509
    %v512 = vsel %vm315, %v510, %v511
    %514 = vst [vmem:[#allocation2 + $0x30] sm:$0xf] %v512
    %515 = vst.sshfl [vmem:[#allocation1] sm:$0xff pattern:$0x75316420] %v291
    %s516 = scalar_lea.vmem [#allocation1], 1
    %v517 = vld [vmem:[%s516] ss:$2 sm:$0xff]
    %518 = vst.sshfl [vmem:[#allocation1 + $0x10] sm:$0xff pattern:$0x75316420] %v293
    %s519 = scalar_lea.vmem [#allocation1], 17
    %v520 = vld [vmem:[%s519] ss:$2 sm:$0xff]
    %521 = vst.sshfl [vmem:[#allocation1 + $0x20] sm:$0xff pattern:$0x75316420] %v295
    %s522 = scalar_lea.vmem [#allocation1], 33
    %v523 = vld [vmem:[%s522] ss:$2 sm:$0xff]
    %524 = vst.sshfl [vmem:[#allocation1 + $0x30] sm:$0xff pattern:$0x75316420] %v297
    %s525 = scalar_lea.vmem [#allocation1], 49
    %v526 = vld [vmem:[%s525] ss:$2 sm:$0xff]
    %v527 = vrot.slane %v517, 1
    %v528 = vsel %vm303, %v520, %v527
    %v529 = vsel %vm305, %v520, %v528
    %v530 = vrot.slane %v523, 7
    %v531 = vsel %vm308, %v530, %v529
    %v532 = vsel %vm310, %v530, %v531
    %v533 = vrot.slane %v526, 6
    %v534 = vsel %vm313, %v533, %v532
    %v535 = vsel %vm315, %v533, %v534
    %537 = vst [vmem:[#allocation2 + $0x34] sm:$0xf] %v535
    %538 = vst.sshfl [vmem:[#allocation1] sm:$0xff pattern:$0x75316420] %v291
    %s539 = scalar_lea.vmem [#allocation1], 1
    %v540 = vld [vmem:[%s539] ss:$2 sm:$0xff]
    %541 = vst.sshfl [vmem:[#allocation1 + $0x10] sm:$0xff pattern:$0x75316420] %v293
    %s542 = scalar_lea.vmem [#allocation1], 17
    %v543 = vld [vmem:[%s542] ss:$2 sm:$0xff]
    %544 = vst.sshfl [vmem:[#allocation1 + $0x20] sm:$0xff pattern:$0x75316420] %v295
    %s545 = scalar_lea.vmem [#allocation1], 33
    %v546 = vld [vmem:[%s545] ss:$2 sm:$0xff]
    %547 = vst.sshfl [vmem:[#allocation1 + $0x30] sm:$0xff pattern:$0x75316420] %v297
    %s548 = scalar_lea.vmem [#allocation1], 49
    %v549 = vld [vmem:[%s548] ss:$2 sm:$0xff]
    %v550 = vrot.slane %v540, 2
    %v551 = vrot.slane %v543, 1
    %v552 = vsel %vm303, %v551, %v550
    %v553 = vsel %vm305, %v551, %v552
    %v554 = vsel %vm308, %v546, %v553
    %v555 = vsel %vm310, %v546, %v554
    %v556 = vrot.slane %v549, 7
    %v557 = vsel %vm313, %v556, %v555
    %v558 = vsel %vm315, %v556, %v557
    %560 = vst [vmem:[#allocation2 + $0x38] sm:$0xf] %v558
    %561 = vst.sshfl [vmem:[#allocation1] sm:$0xff pattern:$0x75316420] %v291
    %s562 = scalar_lea.vmem [#allocation1], 1
    %v563 = vld [vmem:[%s562] ss:$2 sm:$0xff]
    %564 = vst.sshfl [vmem:[#allocation1 + $0x10] sm:$0xff pattern:$0x75316420] %v293
    %s565 = scalar_lea.vmem [#allocation1], 17
    %v566 = vld [vmem:[%s565] ss:$2 sm:$0xff]
    %567 = vst.sshfl [vmem:[#allocation1 + $0x20] sm:$0xff pattern:$0x75316420] %v295
    %s568 = scalar_lea.vmem [#allocation1], 33
    %v569 = vld [vmem:[%s568] ss:$2 sm:$0xff]
    %570 = vst.sshfl [vmem:[#allocation1 + $0x30] sm:$0xff pattern:$0x75316420] %v297
    %s571 = scalar_lea.vmem [#allocation1], 49
    %v572 = vld [vmem:[%s571] ss:$2 sm:$0xff]
    %v573 = vrot.slane %v563, 3
    %v574 = vrot.slane %v566, 2
    %v575 = vsel %vm303, %v574, %v573
    %v576 = vsel %vm305, %v574, %v575
    %v577 = vrot.slane %v569, 1
    %v578 = vsel %vm308, %v577, %v576
    %v579 = vsel %vm310, %v577, %v578
    %v580 = vsel %vm313, %v572, %v579
    %v581 = vsel %vm315, %v572, %v580
    %583 = vst [vmem:[#allocation2 + $0x3c] sm:$0xf] %v581
    %v584 = vld [vmem:[#allocation2] sm:$0xff]
    %v585 = vld [vmem:[#allocation2 + $0x8] sm:$0xff]
    %v586 = vld [vmem:[#allocation2 + $0x10] sm:$0xff]
    %v587 = vld [vmem:[#allocation2 + $0x18] sm:$0xff]
    %v588 = vld [vmem:[#allocation2 + $0x20] sm:$0xff]
    %v589 = vld [vmem:[#allocation2 + $0x28] sm:$0xff]
    %v590 = vld [vmem:[#allocation2 + $0x30] sm:$0xff]
    %v591 = vld [vmem:[#allocation2 + $0x38] sm:$0xff]
    %v592 = vld [vmem:[%s3] sm:$0xff]
    %v593 = vld [vmem:[%s3 + $0x8] sm:$0xff]
    %v594 = vld [vmem:[%s3 + $0x10] sm:$0xff]
    %v595 = vld [vmem:[%s3 + $0x18] sm:$0xff]
    %v596 = vld [vmem:[%s3 + $0x20] sm:$0xff]
    %v597 = vld [vmem:[%s3 + $0x28] sm:$0xff]
    %v598 = vld [vmem:[%s3 + $0x30] sm:$0xff]
    %v599 = vld [vmem:[%s3 + $0x38] sm:$0xff]
    %v600 = vld [vmem:[%s3 + $0x40] sm:$0xff]
    %v601 = vld [vmem:[%s3 + $0x48] sm:$0xff]
    %v602 = vld [vmem:[%s3 + $0x50] sm:$0xff]
    %v603 = vld [vmem:[%s3 + $0x58] sm:$0xff]
    %v604 = vld [vmem:[%s3 + $0x60] sm:$0xff]
    %v605 = vld [vmem:[%s3 + $0x68] sm:$0xff]
    %v606 = vld [vmem:[%s3 + $0x70] sm:$0xff]
    %v607 = vld [vmem:[%s3 + $0x78] sm:$0xff]
    %v608 = vld [vmem:[%s3 + $0x80] sm:$0xff]
    %v609 = vld [vmem:[%s3 + $0x88] sm:$0xff]
    %v610 = vld [vmem:[%s3 + $0x90] sm:$0xff]
    %v611 = vld [vmem:[%s3 + $0x98] sm:$0xff]
    %v612 = vld [vmem:[%s3 + $0xa0] sm:$0xff]
    %v613 = vld [vmem:[%s3 + $0xa8] sm:$0xff]
    %v614 = vld [vmem:[%s3 + $0xb0] sm:$0xff]
    %v615 = vld [vmem:[%s3 + $0xb8] sm:$0xff]
    %v616 = vld [vmem:[%s3 + $0xc0] sm:$0xff]
    %v617 = vld [vmem:[%s3 + $0xc8] sm:$0xff]
    %v618 = vld [vmem:[%s3 + $0xd0] sm:$0xff]
    %v619 = vld [vmem:[%s3 + $0xd8] sm:$0xff]
    %v620 = vld [vmem:[%s3 + $0xe0] sm:$0xff]
    %v621 = vld [vmem:[%s3 + $0xe8] sm:$0xff]
    %v622 = vld [vmem:[%s3 + $0xf0] sm:$0xff]
    %v623 = vld [vmem:[%s3 + $0xf8] sm:$0xff]
    %v624 = vld [vmem:[%s3 + $0x100] sm:$0xff]
    %v625 = vld [vmem:[%s3 + $0x108] sm:$0xff]
    %v626 = vld [vmem:[%s3 + $0x110] sm:$0xff]
    %v627 = vld [vmem:[%s3 + $0x118] sm:$0xff]
    %v628 = vld [vmem:[%s3 + $0x120] sm:$0xff]
    %v629 = vld [vmem:[%s3 + $0x128] sm:$0xff]
    %v630 = vld [vmem:[%s3 + $0x130] sm:$0xff]
    %v631 = vld [vmem:[%s3 + $0x138] sm:$0xff]
    %v632 = vld [vmem:[%s3 + $0x140] sm:$0xff]
    %v633 = vld [vmem:[%s3 + $0x148] sm:$0xff]
    %v634 = vld [vmem:[%s3 + $0x150] sm:$0xff]
    %v635 = vld [vmem:[%s3 + $0x158] sm:$0xff]
    %v636 = vld [vmem:[%s3 + $0x160] sm:$0xff]
    %v637 = vld [vmem:[%s3 + $0x168] sm:$0xff]
    %v638 = vld [vmem:[%s3 + $0x170] sm:$0xff]
    %v639 = vld [vmem:[%s3 + $0x178] sm:$0xff]
    %v640 = vld [vmem:[%s3 + $0x180] sm:$0xff]
    %v641 = vld [vmem:[%s3 + $0x188] sm:$0xff]
    %v642 = vld [vmem:[%s3 + $0x190] sm:$0xff]
    %v643 = vld [vmem:[%s3 + $0x198] sm:$0xff]
    %v644 = vld [vmem:[%s3 + $0x1a0] sm:$0xff]
    %v645 = vld [vmem:[%s3 + $0x1a8] sm:$0xff]
    %v646 = vld [vmem:[%s3 + $0x1b0] sm:$0xff]
    %v647 = vld [vmem:[%s3 + $0x1b8] sm:$0xff]
    %v648 = vld [vmem:[%s3 + $0x1c0] sm:$0xff]
    %v649 = vld [vmem:[%s3 + $0x1c8] sm:$0xff]
    %v650 = vld [vmem:[%s3 + $0x1d0] sm:$0xff]
    %v651 = vld [vmem:[%s3 + $0x1d8] sm:$0xff]
    %v652 = vld [vmem:[%s3 + $0x1e0] sm:$0xff]
    %v653 = vld [vmem:[%s3 + $0x1e8] sm:$0xff]
    %v654 = vld [vmem:[%s3 + $0x1f0] sm:$0xff]
    %v655 = vld [vmem:[%s3 + $0x1f8] sm:$0xff]
    %v656 = vld [vmem:[%s3 + $0x200] sm:$0xff]
    %v657 = vld [vmem:[%s3 + $0x208] sm:$0xff]
    %v658 = vld [vmem:[%s3 + $0x210] sm:$0xff]
    %v659 = vld [vmem:[%s3 + $0x218] sm:$0xff]
    %v660 = vld [vmem:[%s3 + $0x220] sm:$0xff]
    %v661 = vld [vmem:[%s3 + $0x228] sm:$0xff]
    %v662 = vld [vmem:[%s3 + $0x230] sm:$0xff]
    %v663 = vld [vmem:[%s3 + $0x238] sm:$0xff]
    %v664 = vld [vmem:[%s3 + $0x240] sm:$0xff]
    %v665 = vld [vmem:[%s3 + $0x248] sm:$0xff]
    %v666 = vld [vmem:[%s3 + $0x250] sm:$0xff]
    %v667 = vld [vmem:[%s3 + $0x258] sm:$0xff]
    %v668 = vld [vmem:[%s3 + $0x260] sm:$0xff]
    %v669 = vld [vmem:[%s3 + $0x268] sm:$0xff]
    %v670 = vld [vmem:[%s3 + $0x270] sm:$0xff]
    %v671 = vld [vmem:[%s3 + $0x278] sm:$0xff]
    %v672 = vld [vmem:[%s3 + $0x280] sm:$0xff]
    %v673 = vld [vmem:[%s3 + $0x288] sm:$0xff]
    %v674 = vld [vmem:[%s3 + $0x290] sm:$0xff]
    %v675 = vld [vmem:[%s3 + $0x298] sm:$0xff]
    %v676 = vld [vmem:[%s3 + $0x2a0] sm:$0xff]
    %v677 = vld [vmem:[%s3 + $0x2a8] sm:$0xff]
    %v678 = vld [vmem:[%s3 + $0x2b0] sm:$0xff]
    %v679 = vld [vmem:[%s3 + $0x2b8] sm:$0xff]
    %v680 = vld [vmem:[%s3 + $0x2c0] sm:$0xff]
    %v681 = vld [vmem:[%s3 + $0x2c8] sm:$0xff]
    %v682 = vld [vmem:[%s3 + $0x2d0] sm:$0xff]
    %v683 = vld [vmem:[%s3 + $0x2d8] sm:$0xff]
    %v684 = vld [vmem:[%s3 + $0x2e0] sm:$0xff]
    %v685 = vld [vmem:[%s3 + $0x2e8] sm:$0xff]
    %v686 = vld [vmem:[%s3 + $0x2f0] sm:$0xff]
    %v687 = vld [vmem:[%s3 + $0x2f8] sm:$0xff]
    %v688 = vld [vmem:[%s3 + $0x300] sm:$0xff]
    %v689 = vld [vmem:[%s3 + $0x308] sm:$0xff]
    %v690 = vld [vmem:[%s3 + $0x310] sm:$0xff]
    %v691 = vld [vmem:[%s3 + $0x318] sm:$0xff]
    %v692 = vld [vmem:[%s3 + $0x320] sm:$0xff]
    %v693 = vld [vmem:[%s3 + $0x328] sm:$0xff]
    %v694 = vld [vmem:[%s3 + $0x330] sm:$0xff]
    %v695 = vld [vmem:[%s3 + $0x338] sm:$0xff]
    %v696 = vld [vmem:[%s3 + $0x340] sm:$0xff]
    %v697 = vld [vmem:[%s3 + $0x348] sm:$0xff]
    %v698 = vld [vmem:[%s3 + $0x350] sm:$0xff]
    %v699 = vld [vmem:[%s3 + $0x358] sm:$0xff]
    %v700 = vld [vmem:[%s3 + $0x360] sm:$0xff]
    %v701 = vld [vmem:[%s3 + $0x368] sm:$0xff]
    %v702 = vld [vmem:[%s3 + $0x370] sm:$0xff]
    %v703 = vld [vmem:[%s3 + $0x378] sm:$0xff]
    %v704 = vld [vmem:[%s3 + $0x380] sm:$0xff]
    %v705 = vld [vmem:[%s3 + $0x388] sm:$0xff]
    %v706 = vld [vmem:[%s3 + $0x390] sm:$0xff]
    %v707 = vld [vmem:[%s3 + $0x398] sm:$0xff]
    %v708 = vld [vmem:[%s3 + $0x3a0] sm:$0xff]
    %v709 = vld [vmem:[%s3 + $0x3a8] sm:$0xff]
    %v710 = vld [vmem:[%s3 + $0x3b0] sm:$0xff]
    %v711 = vld [vmem:[%s3 + $0x3b8] sm:$0xff]
    %v712 = vld [vmem:[%s3 + $0x3c0] sm:$0xff]
    %v713 = vld [vmem:[%s3 + $0x3c8] sm:$0xff]
    %v714 = vld [vmem:[%s3 + $0x3d0] sm:$0xff]
    %v715 = vld [vmem:[%s3 + $0x3d8] sm:$0xff]
    %v716 = vld [vmem:[%s3 + $0x3e0] sm:$0xff]
    %v717 = vld [vmem:[%s3 + $0x3e8] sm:$0xff]
    %v718 = vld [vmem:[%s3 + $0x3f0] sm:$0xff]
    %v719 = vld [vmem:[%s3 + $0x3f8] sm:$0xff]
    %v720 = vld [vmem:[%s3 + $0x400] sm:$0xff]
    %v721 = vld [vmem:[%s3 + $0x408] sm:$0xff]
    %v722 = vld [vmem:[%s3 + $0x410] sm:$0xff]
    %v723 = vld [vmem:[%s3 + $0x418] sm:$0xff]
    %v724 = vld [vmem:[%s3 + $0x420] sm:$0xff]
    %v725 = vld [vmem:[%s3 + $0x428] sm:$0xff]
    %v726 = vld [vmem:[%s3 + $0x430] sm:$0xff]
    %v727 = vld [vmem:[%s3 + $0x438] sm:$0xff]
    %v728 = vld [vmem:[%s3 + $0x440] sm:$0xff]
    %v729 = vld [vmem:[%s3 + $0x448] sm:$0xff]
    %v730 = vld [vmem:[%s3 + $0x450] sm:$0xff]
    %v731 = vld [vmem:[%s3 + $0x458] sm:$0xff]
    %v732 = vld [vmem:[%s3 + $0x460] sm:$0xff]
    %v733 = vld [vmem:[%s3 + $0x468] sm:$0xff]
    %v734 = vld [vmem:[%s3 + $0x470] sm:$0xff]
    %v735 = vld [vmem:[%s3 + $0x478] sm:$0xff]
    %v736 = vld [vmem:[%s3 + $0x480] sm:$0xff]
    %v737 = vld [vmem:[%s3 + $0x488] sm:$0xff]
    %v738 = vld [vmem:[%s3 + $0x490] sm:$0xff]
    %v739 = vld [vmem:[%s3 + $0x498] sm:$0xff]
    %v740 = vld [vmem:[%s3 + $0x4a0] sm:$0xff]
    %v741 = vld [vmem:[%s3 + $0x4a8] sm:$0xff]
    %v742 = vld [vmem:[%s3 + $0x4b0] sm:$0xff]
    %v743 = vld [vmem:[%s3 + $0x4b8] sm:$0xff]
    %v744 = vld [vmem:[%s3 + $0x4c0] sm:$0xff]
    %v745 = vld [vmem:[%s3 + $0x4c8] sm:$0xff]
    %v746 = vld [vmem:[%s3 + $0x4d0] sm:$0xff]
    %v747 = vld [vmem:[%s3 + $0x4d8] sm:$0xff]
    %v748 = vld [vmem:[%s3 + $0x4e0] sm:$0xff]
    %v749 = vld [vmem:[%s3 + $0x4e8] sm:$0xff]
    %v750 = vld [vmem:[%s3 + $0x4f0] sm:$0xff]
    %v751 = vld [vmem:[%s3 + $0x4f8] sm:$0xff]
    %v752 = vld [vmem:[%s3 + $0x500] sm:$0xff]
    %v753 = vld [vmem:[%s3 + $0x508] sm:$0xff]
    %v754 = vld [vmem:[%s3 + $0x510] sm:$0xff]
    %v755 = vld [vmem:[%s3 + $0x518] sm:$0xff]
    %v756 = vld [vmem:[%s3 + $0x520] sm:$0xff]
    %v757 = vld [vmem:[%s3 + $0x528] sm:$0xff]
    %v758 = vld [vmem:[%s3 + $0x530] sm:$0xff]
    %v759 = vld [vmem:[%s3 + $0x538] sm:$0xff]
    %v760 = vld [vmem:[%s3 + $0x540] sm:$0xff]
    %v761 = vld [vmem:[%s3 + $0x548] sm:$0xff]
    %v762 = vld [vmem:[%s3 + $0x550] sm:$0xff]
    %v763 = vld [vmem:[%s3 + $0x558] sm:$0xff]
    %v764 = vld [vmem:[%s3 + $0x560] sm:$0xff]
    %v765 = vld [vmem:[%s3 + $0x568] sm:$0xff]
    %v766 = vld [vmem:[%s3 + $0x570] sm:$0xff]
    %v767 = vld [vmem:[%s3 + $0x578] sm:$0xff]
    %v768 = vld [vmem:[%s3 + $0x580] sm:$0xff]
    %v769 = vld [vmem:[%s3 + $0x588] sm:$0xff]
    %v770 = vld [vmem:[%s3 + $0x590] sm:$0xff]
    %v771 = vld [vmem:[%s3 + $0x598] sm:$0xff]
    %v772 = vld [vmem:[%s3 + $0x5a0] sm:$0xff]
    %v773 = vld [vmem:[%s3 + $0x5a8] sm:$0xff]
    %v774 = vld [vmem:[%s3 + $0x5b0] sm:$0xff]
    %v775 = vld [vmem:[%s3 + $0x5b8] sm:$0xff]
    %v776 = vld [vmem:[%s3 + $0x5c0] sm:$0xff]
    %v777 = vld [vmem:[%s3 + $0x5c8] sm:$0xff]
    %v778 = vld [vmem:[%s3 + $0x5d0] sm:$0xff]
    %v779 = vld [vmem:[%s3 + $0x5d8] sm:$0xff]
    %v780 = vld [vmem:[%s3 + $0x5e0] sm:$0xff]
    %v781 = vld [vmem:[%s3 + $0x5e8] sm:$0xff]
    %v782 = vld [vmem:[%s3 + $0x5f0] sm:$0xff]
    %v783 = vld [vmem:[%s3 + $0x5f8] sm:$0xff]
    %v784 = vld [vmem:[%s3 + $0x600] sm:$0xff]
    %v785 = vld [vmem:[%s3 + $0x608] sm:$0xff]
    %v786 = vld [vmem:[%s3 + $0x610] sm:$0xff]
    %v787 = vld [vmem:[%s3 + $0x618] sm:$0xff]
    %v788 = vld [vmem:[%s3 + $0x620] sm:$0xff]
    %v789 = vld [vmem:[%s3 + $0x628] sm:$0xff]
    %v790 = vld [vmem:[%s3 + $0x630] sm:$0xff]
    %v791 = vld [vmem:[%s3 + $0x638] sm:$0xff]
    %v792 = vld [vmem:[%s3 + $0x640] sm:$0xff]
    %v793 = vld [vmem:[%s3 + $0x648] sm:$0xff]
    %v794 = vld [vmem:[%s3 + $0x650] sm:$0xff]
    %v795 = vld [vmem:[%s3 + $0x658] sm:$0xff]
    %v796 = vld [vmem:[%s3 + $0x660] sm:$0xff]
    %v797 = vld [vmem:[%s3 + $0x668] sm:$0xff]
    %v798 = vld [vmem:[%s3 + $0x670] sm:$0xff]
    %v799 = vld [vmem:[%s3 + $0x678] sm:$0xff]
    %v800 = vld [vmem:[%s3 + $0x680] sm:$0xff]
    %v801 = vld [vmem:[%s3 + $0x688] sm:$0xff]
    %v802 = vld [vmem:[%s3 + $0x690] sm:$0xff]
    %v803 = vld [vmem:[%s3 + $0x698] sm:$0xff]
    %v804 = vld [vmem:[%s3 + $0x6a0] sm:$0xff]
    %v805 = vld [vmem:[%s3 + $0x6a8] sm:$0xff]
    %v806 = vld [vmem:[%s3 + $0x6b0] sm:$0xff]
    %v807 = vld [vmem:[%s3 + $0x6b8] sm:$0xff]
    %v808 = vld [vmem:[%s3 + $0x6c0] sm:$0xff]
    %v809 = vld [vmem:[%s3 + $0x6c8] sm:$0xff]
    %v810 = vld [vmem:[%s3 + $0x6d0] sm:$0xff]
    %v811 = vld [vmem:[%s3 + $0x6d8] sm:$0xff]
    %v812 = vld [vmem:[%s3 + $0x6e0] sm:$0xff]
    %v813 = vld [vmem:[%s3 + $0x6e8] sm:$0xff]
    %v814 = vld [vmem:[%s3 + $0x6f0] sm:$0xff]
    %v815 = vld [vmem:[%s3 + $0x6f8] sm:$0xff]
    %v816 = vld [vmem:[%s3 + $0x700] sm:$0xff]
    %v817 = vld [vmem:[%s3 + $0x708] sm:$0xff]
    %v818 = vld [vmem:[%s3 + $0x710] sm:$0xff]
    %v819 = vld [vmem:[%s3 + $0x718] sm:$0xff]
    %v820 = vld [vmem:[%s3 + $0x720] sm:$0xff]
    %v821 = vld [vmem:[%s3 + $0x728] sm:$0xff]
    %v822 = vld [vmem:[%s3 + $0x730] sm:$0xff]
    %v823 = vld [vmem:[%s3 + $0x738] sm:$0xff]
    %v824 = vld [vmem:[%s3 + $0x740] sm:$0xff]
    %v825 = vld [vmem:[%s3 + $0x748] sm:$0xff]
    %v826 = vld [vmem:[%s3 + $0x750] sm:$0xff]
    %v827 = vld [vmem:[%s3 + $0x758] sm:$0xff]
    %v828 = vld [vmem:[%s3 + $0x760] sm:$0xff]
    %v829 = vld [vmem:[%s3 + $0x768] sm:$0xff]
    %v830 = vld [vmem:[%s3 + $0x770] sm:$0xff]
    %v831 = vld [vmem:[%s3 + $0x778] sm:$0xff]
    %v832 = vld [vmem:[%s3 + $0x780] sm:$0xff]
    %v833 = vld [vmem:[%s3 + $0x788] sm:$0xff]
    %v834 = vld [vmem:[%s3 + $0x790] sm:$0xff]
    %v835 = vld [vmem:[%s3 + $0x798] sm:$0xff]
    %v836 = vld [vmem:[%s3 + $0x7a0] sm:$0xff]
    %v837 = vld [vmem:[%s3 + $0x7a8] sm:$0xff]
    %v838 = vld [vmem:[%s3 + $0x7b0] sm:$0xff]
    %v839 = vld [vmem:[%s3 + $0x7b8] sm:$0xff]
    %v840 = vld [vmem:[%s3 + $0x7c0] sm:$0xff]
    %v841 = vld [vmem:[%s3 + $0x7c8] sm:$0xff]
    %v842 = vld [vmem:[%s3 + $0x7d0] sm:$0xff]
    %v843 = vld [vmem:[%s3 + $0x7d8] sm:$0xff]
    %v844 = vld [vmem:[%s3 + $0x7e0] sm:$0xff]
    %v845 = vld [vmem:[%s3 + $0x7e8] sm:$0xff]
    %v846 = vld [vmem:[%s3 + $0x7f0] sm:$0xff]
    %v847 = vld [vmem:[%s3 + $0x7f8] sm:$0xff]
    %v848 = vld [vmem:[%s4] sm:$0x1]
    %v850 = vperm.slane %v848, 0
    %860 = vst [vmem:[#allocation1] ss:$2 sm:$0xff] %v584
    %s861 = scalar_lea.vmem [#allocation1], 16
    %862 = vst [vmem:[%s861] ss:$2 sm:$0xff] %v585
    %s863 = scalar_lea.vmem [#allocation1], 32
    %864 = vst [vmem:[%s863] ss:$2 sm:$0xff] %v586
    %s865 = scalar_lea.vmem [#allocation1], 48
    %866 = vst [vmem:[%s865] ss:$2 sm:$0xff] %v587
    %v867 = vld.sshfl [vmem:[#allocation1] sm:$0xff pattern:$0x75316420]
    %v868 = vld.sshfl [vmem:[#allocation1 + $0x8] sm:$0xff pattern:$0x75316420]
    %v869 = vld.sshfl [vmem:[#allocation1 + $0x10] sm:$0xff pattern:$0x75316420]
    %v870 = vld.sshfl [vmem:[#allocation1 + $0x18] sm:$0xff pattern:$0x75316420]
    %v871 = vld.sshfl [vmem:[#allocation1 + $0x20] sm:$0xff pattern:$0x75316420]
    %v872 = vld.sshfl [vmem:[#allocation1 + $0x28] sm:$0xff pattern:$0x75316420]
    %v873 = vld.sshfl [vmem:[#allocation1 + $0x30] sm:$0xff pattern:$0x75316420]
    %v874 = vld.sshfl [vmem:[#allocation1 + $0x38] sm:$0xff pattern:$0x75316420]
    %875 = vst [vmem:[#allocation1] ss:$2 sm:$0xff] %v588
    %876 = vst [vmem:[%s861] ss:$2 sm:$0xff] %v589
    %877 = vst [vmem:[%s863] ss:$2 sm:$0xff] %v590
    %878 = vst [vmem:[%s865] ss:$2 sm:$0xff] %v591
    %v879 = vld.sshfl [vmem:[#allocation1] sm:$0xff pattern:$0x75316420]
    %v880 = vld.sshfl [vmem:[#allocation1 + $0x8] sm:$0xff pattern:$0x75316420]
    %v881 = vld.sshfl [vmem:[#allocation1 + $0x10] sm:$0xff pattern:$0x75316420]
    %v882 = vld.sshfl [vmem:[#allocation1 + $0x18] sm:$0xff pattern:$0x75316420]
    %v883 = vld.sshfl [vmem:[#allocation1 + $0x20] sm:$0xff pattern:$0x75316420]
    %v884 = vld.sshfl [vmem:[#allocation1 + $0x28] sm:$0xff pattern:$0x75316420]
    %v885 = vld.sshfl [vmem:[#allocation1 + $0x30] sm:$0xff pattern:$0x75316420]
    %v886 = vld.sshfl [vmem:[#allocation1 + $0x38] sm:$0xff pattern:$0x75316420]
    %903 = vmatpush.msra.mxu0 %v607
    %904 = vmatpush.msra.mxu0 %v606
    %905 = vmatpush.msra.mxu0 %v605
    %906 = vmatpush.msra.mxu0 %v604
    %907 = vmatpush.msra.mxu0 %v603
    %908 = vmatpush.msra.mxu0 %v602
    %909 = vmatpush.msra.mxu0 %v601
    %910 = vmatpush.msra.mxu0 %v600
    %911 = vmatpush.msra.mxu0 %v599
    %912 = vmatpush.msra.mxu0 %v598
    %913 = vmatpush.msra.mxu0 %v597
    %914 = vmatpush.msra.mxu0 %v596
    %915 = vmatpush.msra.mxu0 %v595
    %916 = vmatpush.msra.mxu0 %v594
    %917 = vmatpush.msra.mxu0 %v593
    %918 = vmatpush.msra.mxu0 %v592
    %919 = vmatmul.f32.gmra.mxu0 %v867
    %v920 = vpop.f32.mrf.mxu0
    %v921 = vadd.f32 %v850, %v920
    %922 = vdwg.mxu0
    %923 = vmatpush.msra.mxu0 %v623
    %924 = vmatpush.msra.mxu0 %v622
    %925 = vmatpush.msra.mxu0 %v621
    %926 = vmatpush.msra.mxu0 %v620
    %927 = vmatpush.msra.mxu0 %v619
    %928 = vmatpush.msra.mxu0 %v618
    %929 = vmatpush.msra.mxu0 %v617
    %930 = vmatpush.msra.mxu0 %v616
    %931 = vmatpush.msra.mxu0 %v615
    %932 = vmatpush.msra.mxu0 %v614
    %933 = vmatpush.msra.mxu0 %v613
    %934 = vmatpush.msra.mxu0 %v612
    %935 = vmatpush.msra.mxu0 %v611
    %936 = vmatpush.msra.mxu0 %v610
    %937 = vmatpush.msra.mxu0 %v609
    %938 = vmatpush.msra.mxu0 %v608
    %939 = vmatmul.f32.gmra.mxu0 %v868
    %v940 = vpop.f32.mrf.mxu0
    %v941 = vadd.f32 %v921, %v940
    %942 = vdwg.mxu0
    %943 = vmatpush.msra.mxu0 %v639
    %944 = vmatpush.msra.mxu0 %v638
    %945 = vmatpush.msra.mxu0 %v637
    %946 = vmatpush.msra.mxu0 %v636
    %947 = vmatpush.msra.mxu0 %v635
    %948 = vmatpush.msra.mxu0 %v634
    %949 = vmatpush.msra.mxu0 %v633
    %950 = vmatpush.msra.mxu0 %v632
    %951 = vmatpush.msra.mxu0 %v631
    %952 = vmatpush.msra.mxu0 %v630
    %953 = vmatpush.msra.mxu0 %v629
    %954 = vmatpush.msra.mxu0 %v628
    %955 = vmatpush.msra.mxu0 %v627
    %956 = vmatpush.msra.mxu0 %v626
    %957 = vmatpush.msra.mxu0 %v625
    %958 = vmatpush.msra.mxu0 %v624
    %959 = vmatmul.f32.gmra.mxu0 %v869
    %v960 = vpop.f32.mrf.mxu0
    %v961 = vadd.f32 %v941, %v960
    %962 = vdwg.mxu0
    %963 = vmatpush.msra.mxu0 %v655
    %964 = vmatpush.msra.mxu0 %v654
    %965 = vmatpush.msra.mxu0 %v653
    %966 = vmatpush.msra.mxu0 %v652
    %967 = vmatpush.msra.mxu0 %v651
    %968 = vmatpush.msra.mxu0 %v650
    %969 = vmatpush.msra.mxu0 %v649
    %970 = vmatpush.msra.mxu0 %v648
    %971 = vmatpush.msra.mxu0 %v647
    %972 = vmatpush.msra.mxu0 %v646
    %973 = vmatpush.msra.mxu0 %v645
    %974 = vmatpush.msra.mxu0 %v644
    %975 = vmatpush.msra.mxu0 %v643
    %976 = vmatpush.msra.mxu0 %v642
    %977 = vmatpush.msra.mxu0 %v641
    %978 = vmatpush.msra.mxu0 %v640
    %979 = vmatmul.f32.gmra.mxu0 %v870
    %v980 = vpop.f32.mrf.mxu0
    %v981 = vadd.f32 %v961, %v980
    %982 = vdwg.mxu0
    %983 = vmatpush.msra.mxu0 %v671
    %984 = vmatpush.msra.mxu0 %v670
    %985 = vmatpush.msra.mxu0 %v669
    %986 = vmatpush.msra.mxu0 %v668
    %987 = vmatpush.msra.mxu0 %v667
    %988 = vmatpush.msra.mxu0 %v666
    %989 = vmatpush.msra.mxu0 %v665
    %990 = vmatpush.msra.mxu0 %v664
    %991 = vmatpush.msra.mxu0 %v663
    %992 = vmatpush.msra.mxu0 %v662
    %993 = vmatpush.msra.mxu0 %v661
    %994 = vmatpush.msra.mxu0 %v660
    %995 = vmatpush.msra.mxu0 %v659
    %996 = vmatpush.msra.mxu0 %v658
    %997 = vmatpush.msra.mxu0 %v657
    %998 = vmatpush.msra.mxu0 %v656
    %999 = vmatmul.f32.gmra.mxu0 %v871
    %v1000 = vpop.f32.mrf.mxu0
    %v1001 = vadd.f32 %v981, %v1000
    %1002 = vdwg.mxu0
    %1003 = vmatpush.msra.mxu0 %v687
    %1004 = vmatpush.msra.mxu0 %v686
    %1005 = vmatpush.msra.mxu0 %v685
    %1006 = vmatpush.msra.mxu0 %v684
    %1007 = vmatpush.msra.mxu0 %v683
    %1008 = vmatpush.msra.mxu0 %v682
    %1009 = vmatpush.msra.mxu0 %v681
    %1010 = vmatpush.msra.mxu0 %v680
    %1011 = vmatpush.msra.mxu0 %v679
    %1012 = vmatpush.msra.mxu0 %v678
    %1013 = vmatpush.msra.mxu0 %v677
    %1014 = vmatpush.msra.mxu0 %v676
    %1015 = vmatpush.msra.mxu0 %v675
    %1016 = vmatpush.msra.mxu0 %v674
    %1017 = vmatpush.msra.mxu0 %v673
    %1018 = vmatpush.msra.mxu0 %v672
    %1019 = vmatmul.f32.gmra.mxu0 %v872
    %v1020 = vpop.f32.mrf.mxu0
    %v1021 = vadd.f32 %v1001, %v1020
    %1022 = vdwg.mxu0
    %1023 = vmatpush.msra.mxu0 %v703
    %1024 = vmatpush.msra.mxu0 %v702
    %1025 = vmatpush.msra.mxu0 %v701
    %1026 = vmatpush.msra.mxu0 %v700
    %1027 = vmatpush.msra.mxu0 %v699
    %1028 = vmatpush.msra.mxu0 %v698
    %1029 = vmatpush.msra.mxu0 %v697
    %1030 = vmatpush.msra.mxu0 %v696
    %1031 = vmatpush.msra.mxu0 %v695
    %1032 = vmatpush.msra.mxu0 %v694
    %1033 = vmatpush.msra.mxu0 %v693
    %1034 = vmatpush.msra.mxu0 %v692
    %1035 = vmatpush.msra.mxu0 %v691
    %1036 = vmatpush.msra.mxu0 %v690
    %1037 = vmatpush.msra.mxu0 %v689
    %1038 = vmatpush.msra.mxu0 %v688
    %1039 = vmatmul.f32.gmra.mxu0 %v873
    %v1040 = vpop.f32.mrf.mxu0
    %v1041 = vadd.f32 %v1021, %v1040
    %1042 = vdwg.mxu0
    %1043 = vmatpush.msra.mxu0 %v719
    %1044 = vmatpush.msra.mxu0 %v718
    %1045 = vmatpush.msra.mxu0 %v717
    %1046 = vmatpush.msra.mxu0 %v716
    %1047 = vmatpush.msra.mxu0 %v715
    %1048 = vmatpush.msra.mxu0 %v714
    %1049 = vmatpush.msra.mxu0 %v713
    %1050 = vmatpush.msra.mxu0 %v712
    %1051 = vmatpush.msra.mxu0 %v711
    %1052 = vmatpush.msra.mxu0 %v710
    %1053 = vmatpush.msra.mxu0 %v709
    %1054 = vmatpush.msra.mxu0 %v708
    %1055 = vmatpush.msra.mxu0 %v707
    %1056 = vmatpush.msra.mxu0 %v706
    %1057 = vmatpush.msra.mxu0 %v705
    %1058 = vmatpush.msra.mxu0 %v704
    %1059 = vmatmul.f32.gmra.mxu0 %v874
    %v1060 = vpop.f32.mrf.mxu0
    %v1061 = vadd.f32 %v1041, %v1060
    %1062 = vdwg.mxu0
    %1063 = vmatpush.msra.mxu0 %v735
    %1064 = vmatpush.msra.mxu0 %v734
    %1065 = vmatpush.msra.mxu0 %v733
    %1066 = vmatpush.msra.mxu0 %v732
    %1067 = vmatpush.msra.mxu0 %v731
    %1068 = vmatpush.msra.mxu0 %v730
    %1069 = vmatpush.msra.mxu0 %v729
    %1070 = vmatpush.msra.mxu0 %v728
    %1071 = vmatpush.msra.mxu0 %v727
    %1072 = vmatpush.msra.mxu0 %v726
    %1073 = vmatpush.msra.mxu0 %v725
    %1074 = vmatpush.msra.mxu0 %v724
    %1075 = vmatpush.msra.mxu0 %v723
    %1076 = vmatpush.msra.mxu0 %v722
    %1077 = vmatpush.msra.mxu0 %v721
    %1078 = vmatpush.msra.mxu0 %v720
    %1079 = vmatmul.f32.gmra.mxu0 %v879
    %v1080 = vpop.f32.mrf.mxu0
    %v1081 = vadd.f32 %v1061, %v1080
    %1082 = vdwg.mxu0
    %1083 = vmatpush.msra.mxu0 %v751
    %1084 = vmatpush.msra.mxu0 %v750
    %1085 = vmatpush.msra.mxu0 %v749
    %1086 = vmatpush.msra.mxu0 %v748
    %1087 = vmatpush.msra.mxu0 %v747
    %1088 = vmatpush.msra.mxu0 %v746
    %1089 = vmatpush.msra.mxu0 %v745
    %1090 = vmatpush.msra.mxu0 %v744
    %1091 = vmatpush.msra.mxu0 %v743
    %1092 = vmatpush.msra.mxu0 %v742
    %1093 = vmatpush.msra.mxu0 %v741
    %1094 = vmatpush.msra.mxu0 %v740
    %1095 = vmatpush.msra.mxu0 %v739
    %1096 = vmatpush.msra.mxu0 %v738
    %1097 = vmatpush.msra.mxu0 %v737
    %1098 = vmatpush.msra.mxu0 %v736
    %1099 = vmatmul.f32.gmra.mxu0 %v880
    %v1100 = vpop.f32.mrf.mxu0
    %v1101 = vadd.f32 %v1081, %v1100
    %1102 = vdwg.mxu0
    %1103 = vmatpush.msra.mxu0 %v767
    %1104 = vmatpush.msra.mxu0 %v766
    %1105 = vmatpush.msra.mxu0 %v765
    %1106 = vmatpush.msra.mxu0 %v764
    %1107 = vmatpush.msra.mxu0 %v763
    %1108 = vmatpush.msra.mxu0 %v762
    %1109 = vmatpush.msra.mxu0 %v761
    %1110 = vmatpush.msra.mxu0 %v760
    %1111 = vmatpush.msra.mxu0 %v759
    %1112 = vmatpush.msra.mxu0 %v758
    %1113 = vmatpush.msra.mxu0 %v757
    %1114 = vmatpush.msra.mxu0 %v756
    %1115 = vmatpush.msra.mxu0 %v755
    %1116 = vmatpush.msra.mxu0 %v754
    %1117 = vmatpush.msra.mxu0 %v753
    %1118 = vmatpush.msra.mxu0 %v752
    %1119 = vmatmul.f32.gmra.mxu0 %v881
    %v1120 = vpop.f32.mrf.mxu0
    %v1121 = vadd.f32 %v1101, %v1120
    %1122 = vdwg.mxu0
    %1123 = vmatpush.msra.mxu0 %v783
    %1124 = vmatpush.msra.mxu0 %v782
    %1125 = vmatpush.msra.mxu0 %v781
    %1126 = vmatpush.msra.mxu0 %v780
    %1127 = vmatpush.msra.mxu0 %v779
    %1128 = vmatpush.msra.mxu0 %v778
    %1129 = vmatpush.msra.mxu0 %v777
    %1130 = vmatpush.msra.mxu0 %v776
    %1131 = vmatpush.msra.mxu0 %v775
    %1132 = vmatpush.msra.mxu0 %v774
    %1133 = vmatpush.msra.mxu0 %v773
    %1134 = vmatpush.msra.mxu0 %v772
    %1135 = vmatpush.msra.mxu0 %v771
    %1136 = vmatpush.msra.mxu0 %v770
    %1137 = vmatpush.msra.mxu0 %v769
    %1138 = vmatpush.msra.mxu0 %v768
    %1139 = vmatmul.f32.gmra.mxu0 %v882
    %v1140 = vpop.f32.mrf.mxu0
    %v1141 = vadd.f32 %v1121, %v1140
    %1142 = vdwg.mxu0
    %1143 = vmatpush.msra.mxu0 %v799
    %1144 = vmatpush.msra.mxu0 %v798
    %1145 = vmatpush.msra.mxu0 %v797
    %1146 = vmatpush.msra.mxu0 %v796
    %1147 = vmatpush.msra.mxu0 %v795
    %1148 = vmatpush.msra.mxu0 %v794
    %1149 = vmatpush.msra.mxu0 %v793
    %1150 = vmatpush.msra.mxu0 %v792
    %1151 = vmatpush.msra.mxu0 %v791
    %1152 = vmatpush.msra.mxu0 %v790
    %1153 = vmatpush.msra.mxu0 %v789
    %1154 = vmatpush.msra.mxu0 %v788
    %1155 = vmatpush.msra.mxu0 %v787
    %1156 = vmatpush.msra.mxu0 %v786
    %1157 = vmatpush.msra.mxu0 %v785
    %1158 = vmatpush.msra.mxu0 %v784
    %1159 = vmatmul.f32.gmra.mxu0 %v883
    %v1160 = vpop.f32.mrf.mxu0
    %v1161 = vadd.f32 %v1141, %v1160
    %1162 = vdwg.mxu0
    %1163 = vmatpush.msra.mxu0 %v815
    %1164 = vmatpush.msra.mxu0 %v814
    %1165 = vmatpush.msra.mxu0 %v813
    %1166 = vmatpush.msra.mxu0 %v812
    %1167 = vmatpush.msra.mxu0 %v811
    %1168 = vmatpush.msra.mxu0 %v810
    %1169 = vmatpush.msra.mxu0 %v809
    %1170 = vmatpush.msra.mxu0 %v808
    %1171 = vmatpush.msra.mxu0 %v807
    %1172 = vmatpush.msra.mxu0 %v806
    %1173 = vmatpush.msra.mxu0 %v805
    %1174 = vmatpush.msra.mxu0 %v804
    %1175 = vmatpush.msra.mxu0 %v803
    %1176 = vmatpush.msra.mxu0 %v802
    %1177 = vmatpush.msra.mxu0 %v801
    %1178 = vmatpush.msra.mxu0 %v800
    %1179 = vmatmul.f32.gmra.mxu0 %v884
    %v1180 = vpop.f32.mrf.mxu0
    %v1181 = vadd.f32 %v1161, %v1180
    %1182 = vdwg.mxu0
    %1183 = vmatpush.msra.mxu0 %v831
    %1184 = vmatpush.msra.mxu0 %v830
    %1185 = vmatpush.msra.mxu0 %v829
    %1186 = vmatpush.msra.mxu0 %v828
    %1187 = vmatpush.msra.mxu0 %v827
    %1188 = vmatpush.msra.mxu0 %v826
    %1189 = vmatpush.msra.mxu0 %v825
    %1190 = vmatpush.msra.mxu0 %v824
    %1191 = vmatpush.msra.mxu0 %v823
    %1192 = vmatpush.msra.mxu0 %v822
    %1193 = vmatpush.msra.mxu0 %v821
    %1194 = vmatpush.msra.mxu0 %v820
    %1195 = vmatpush.msra.mxu0 %v819
    %1196 = vmatpush.msra.mxu0 %v818
    %1197 = vmatpush.msra.mxu0 %v817
    %1198 = vmatpush.msra.mxu0 %v816
    %1199 = vmatmul.f32.gmra.mxu0 %v885
    %v1200 = vpop.f32.mrf.mxu0
    %v1201 = vadd.f32 %v1181, %v1200
    %1202 = vdwg.mxu0
    %1203 = vmatpush.msra.mxu0 %v847
    %1204 = vmatpush.msra.mxu0 %v846
    %1205 = vmatpush.msra.mxu0 %v845
    %1206 = vmatpush.msra.mxu0 %v844
    %1207 = vmatpush.msra.mxu0 %v843
    %1208 = vmatpush.msra.mxu0 %v842
    %1209 = vmatpush.msra.mxu0 %v841
    %1210 = vmatpush.msra.mxu0 %v840
    %1211 = vmatpush.msra.mxu0 %v839
    %1212 = vmatpush.msra.mxu0 %v838
    %1213 = vmatpush.msra.mxu0 %v837
    %1214 = vmatpush.msra.mxu0 %v836
    %1215 = vmatpush.msra.mxu0 %v835
    %1216 = vmatpush.msra.mxu0 %v834
    %1217 = vmatpush.msra.mxu0 %v833
    %1218 = vmatpush.msra.mxu0 %v832
    %1219 = vmatmul.f32.gmra.mxu0 %v886
    %v1220 = vpop.f32.mrf.mxu0
    %v1221 = vadd.f32 %v1201, %v1220
    %1222 = vdwg.mxu0
    %vm1223 = vcmask 254976
    %1224 = vst.msk [vmem:[#allocation3] sm:$0x3] %vm1223, %v1221
    %1226 = vrot.lane.b32.xlu0 %v1221, 32
    %v1227 = vpop.permute.xlu0 %1226
    %vm1229 = vcmask 519426
    %1230 = vst.msk [vmem:[#allocation3 - $0x2] sm:$0xc] %vm1229, %v1227
    // Predicated region
    $region22: #{_siamese_forward_impl.1} parent=1 // pred_check
      _
    $region23: #{_siamese_forward_impl.1} parent=1 // pred_check_branch
      %1232 = sbr.rel (0) target = $region25
    $region24: #{_siamese_forward_impl.1} parent=1 // pred_region
      %1234 = vsyncadd [#allocation4], 0
      %s1236 = sshll.u32 [#allocation3], 4
      %s1237 = int_to_ptr.vmem [resolvable:$true] %s1236
      %s1238 = sshll.u32 %s5, 4
      %s1239 = int_to_ptr.hbm [resolvable:$true] %s1238
      %1241 = dma.vmem_to_hbm [thread:$0]  %s1237, 32, %s1239, [#allocation4]
    $region25: #{_siamese_forward_impl.1} parent=1 // pred_fallthru
      _
    // Predicated region
    $region26: #{_siamese_forward_impl.1} parent=1 // pred_check
      _
    $region27: #{_siamese_forward_impl.1} parent=1 // pred_check_branch
      %1243 = sbr.rel (0) target = $region29
    $region28: #{_siamese_forward_impl.1} parent=1 // pred_region
      %1245 = dma.done [#allocation4], 32
    $region29: #{_siamese_forward_impl.1} parent=1 // pred_fallthru
      _
    %1246 = vsyncpa [#allocation4], 1

</llo_original>
